<compile_context>
chip_gen: v5e
topology: v5e:2x2
jax: 0.10.0
libtpu: 0.0.40
codegen_flags: <defaults>
</compile_context>

<pallas_src>
import jax
import jax.numpy as jnp
from jax import lax
from jax.experimental import pallas as pl
from jax.experimental.pallas import tpu as pltpu

NEG_SLOPE = 0.01        # nn.LeakyReLU default
NUM_RGCN_LAYERS = 8
OUT_PAD = 128           # lane-pad the 2-wide classification head


def _leaky(x):
    return jnp.where(x > 0, x, NEG_SLOPE * x)


def _round_up(x, m):
    return ((x + m - 1) // m) * m


# ----------------------------------------------------------------------------
# Fused Pallas kernel: encoders + concat + input linear + 8x RGCN + head
# ----------------------------------------------------------------------------
def _drgcn_fused_kernel(xall_ref, wenc_ref, benc_ref, winp_ref, binp_ref,
                        a01_ref, wall_ref, br_ref,
                        wout1_ref, bout1_ref, wout2_ref, bout2_ref, o_ref):
    # ---- feature encoders: 4 linears + concat fused via block-diagonal weight
    x = jnp.dot(xall_ref[...], wenc_ref[...], preferred_element_type=jnp.float32)
    x = _leaky(x + benc_ref[...])

    # ---- linear_relu_input
    x = jnp.dot(x, winp_ref[...], preferred_element_type=jnp.float32)
    x = _leaky(x + binp_ref[...])

    # ---- 8 shared RGCNConv layers; x stays resident in VMEM/vregs throughout
    n, d = x.shape
    a01 = a01_ref[...]                                   # (N, 2N) == [A0 | A1]
    w_all = wall_ref[...]                                # (D, 3D) == [W_root | W0 | W1]
    b_r = jnp.broadcast_to(br_ref[...], (n, d))          # hoisted out of the loop

    def layer(_, xc):
        # Single MXU dot produces root + both relation transforms at once.
        h = jnp.dot(xc, w_all, preferred_element_type=jnp.float32)        # (N, 3D)
        # Lane slices at multiples of 128 are tile-aligned (cheap).
        hv = jnp.concatenate([h[:, d:2 * d], h[:, 2 * d:]], axis=0)       # (2N, D)
        agg = jnp.dot(a01, hv, preferred_element_type=jnp.float32)        # K = 2N
        # F.dropout(..., training=False) -> identity in inference mode.
        return h[:, :d] + agg + b_r

    x = lax.fori_loop(0, NUM_RGCN_LAYERS, layer, x, unroll=True)

    # ---- output head: linear_relu_output1 then linear_output2 (lane-padded)
    x = jnp.dot(x, wout1_ref[...], preferred_element_type=jnp.float32)
    x = _leaky(x + bout1_ref[...])
    y = jnp.dot(x, wout2_ref[...], preferred_element_type=jnp.float32)
    o_ref[...] = (y + bout2_ref[...]).astype(o_ref.dtype)


def _vmem_spec():
    return pl.BlockSpec(memory_space=pltpu.MemorySpace.VMEM)


def _drgcn_fused_call(*args):
    n = args[0].shape[0]
    return pl.pallas_call(
        _drgcn_fused_kernel,
        out_shape=jax.ShapeDtypeStruct((n, OUT_PAD), jnp.float32),
        in_specs=[_vmem_spec() for _ in args],
        out_specs=_vmem_spec(),
    )(*args)


# ----------------------------------------------------------------------------
# Glue (plain JAX): parameter init, adjacency build, operand packing
# ----------------------------------------------------------------------------
def _init_linear(key, fan_in, fan_out):
    # PyTorch nn.Linear default init (uniform +-1/sqrt(fan_in)); stored as (K, M).
    kw, kb = jax.random.split(key)
    bound = 1.0 / jnp.sqrt(jnp.float32(fan_in))
    w = jax.random.uniform(kw, (fan_in, fan_out), jnp.float32, -bound, bound)
    b = jax.random.uniform(kb, (fan_out,), jnp.float32, -bound, bound)
    return w, b


def init_params(key, des_size=768, tweet_size=768, num_prop_size=6,
                cat_prop_size=11, emb=128):
    ks = jax.random.split(key, 10)
    q = emb // 4
    params = {
        "des": _init_linear(ks[0], des_size, q),
        "tweet": _init_linear(ks[1], tweet_size, q),
        "num": _init_linear(ks[2], num_prop_size, q),
        "cat": _init_linear(ks[3], cat_prop_size, q),
        "inp": _init_linear(ks[4], emb, emb),
        "out1": _init_linear(ks[5], emb, emb),
        "out2": _init_linear(ks[6], emb, 2),
    }
    # RGCNConv(emb, emb, num_relations=2): per-relation weights, root weight, bias.
    scale = 1.0 / jnp.sqrt(jnp.float32(emb))
    w0 = jax.random.uniform(ks[7], (emb, emb), jnp.float32, -scale, scale)
    w1 = jax.random.uniform(ks[8], (emb, emb), jnp.float32, -scale, scale)
    kwr, kbr = jax.random.split(ks[9])
    w_root = jax.random.uniform(kwr, (emb, emb), jnp.float32, -scale, scale)
    b_r = jax.random.uniform(kbr, (emb,), jnp.float32, -scale, scale)
    params["rgcn"] = (w_root, w0, w1, b_r)
    return params


def _block_diag_encoder(params):
    """Fold the 4 feature-encoder linears + concat into one (K_total, emb) weight."""
    wd, bd = params["des"]
    wt, bt = params["tweet"]
    wn, bn = params["num"]
    wc, bc = params["cat"]
    kd, q = wd.shape
    kt, kn, kc = wt.shape[0], wn.shape[0], wc.shape[0]
    k_total = kd + kt + kn + kc
    w = jnp.zeros((k_total, 4 * q), jnp.float32)
    w = w.at[:kd, 0 * q:1 * q].set(wd)
    w = w.at[kd:kd + kt, 1 * q:2 * q].set(wt)
    w = w.at[kd + kt:kd + kt + kn, 2 * q:3 * q].set(wn)
    w = w.at[kd + kt + kn:, 3 * q:4 * q].set(wc)
    b = jnp.concatenate([bd, bt, bn, bc])
    return w, b


def build_rel_adj(edge_index, edge_type, num_nodes, rel):
    """Dense mean-normalized adjacency for one relation.
    A[i, j] = count(edges j->i of type rel) / deg_rel(i)."""
    src, dst = edge_index[0], edge_index[1]
    w = (edge_type == rel).astype(jnp.float32)
    a = jnp.zeros((num_nodes, num_nodes), jnp.float32)
    a = a.at[dst, src].add(w)
    deg = a.sum(axis=1, keepdims=True)
    return a / jnp.maximum(deg, 1.0)


def drgcn_8layers_forward(params, des, tweet, num_prop, cat_prop,
                          edge_index, edge_type):
    num_nodes = des.shape[0]
    emb = params["inp"][0].shape[0]

    # One block-diagonal encoder matmul replaces 4 linears + torch.cat.
    x_all = jnp.concatenate([des, tweet, num_prop, cat_prop], axis=1)
    w_enc, b_enc = _block_diag_encoder(params)

    # Zero-pad the encoder contraction dim to a multiple of 128 (tile-aligned MXU).
    k_total = x_all.shape[1]
    k_pad = _round_up(k_total, 128)
    if k_pad != k_total:
        x_all = jnp.pad(x_all, ((0, 0), (0, k_pad - k_total)))
        w_enc = jnp.pad(w_enc, ((0, k_pad - k_total), (0, 0)))

    # Pad node count to a sublane multiple of 8 (padding rows/cols are zero and
    # never feed back into real nodes because their adjacency columns are zero).
    n_pad = _round_up(num_nodes, 8)
    if n_pad != num_nodes:
        x_all = jnp.pad(x_all, ((0, n_pad - num_nodes), (0, 0)))

    # Relation-concatenated, mean-normalized adjacency: (N, 2N) = [A0 | A1].
    a0 = build_rel_adj(edge_index, edge_type, num_nodes, 0)
    a1 = build_rel_adj(edge_index, edge_type, num_nodes, 1)
    if n_pad != num_nodes:
        p = n_pad - num_nodes
        a0 = jnp.pad(a0, ((0, p), (0, p)))
        a1 = jnp.pad(a1, ((0, p), (0, p)))
    a01 = jnp.concatenate([a0, a1], axis=1)

    w_root, w0, w1, b_r = params["rgcn"]
    # One combined RGCN weight: a single K=emb, M=3*emb dot per layer.
    w_all = jnp.concatenate([w_root, w0, w1], axis=1)     # (emb, 3*emb)

    w_inp, b_inp = params["inp"]
    w_out1, b_out1 = params["out1"]
    w_out2, b_out2 = params["out2"]

    # Lane-pad the 2-class head so the kernel's final store is unmasked.
    w_out2p = jnp.zeros((emb, OUT_PAD), jnp.float32).at[:, :2].set(w_out2)
    b_out2p = jnp.zeros((OUT_PAD,), jnp.float32).at[:2].set(b_out2)

    out_slab = _drgcn_fused_call(
        x_all, w_enc, b_enc.reshape(1, -1),
        w_inp, b_inp.reshape(1, -1),
        a01,
        w_all, b_r.reshape(1, -1),
        w_out1, b_out1.reshape(1, -1),
        w_out2p, b_out2p.reshape(1, -1),
    )
    return out_slab[:num_nodes, :2]


# ----------------------------------------------------------------------------
if __name__ == "__main__":
    key = jax.random.PRNGKey(0)
    k_par, k_des, k_tw, k_np, k_cp, k_src, k_dst, k_et = jax.random.split(key, 8)

    N_NODES = 64
    N_EDGES = 256
    DES, TWEET, NUMP, CATP, EMB = 768, 768, 6, 11, 128

    params = init_params(k_par, DES, TWEET, NUMP, CATP, EMB)

    des = jax.random.normal(k_des, (N_NODES, DES), jnp.float32)
    tweet = jax.random.normal(k_tw, (N_NODES, TWEET), jnp.float32)
    num_prop = jax.random.normal(k_np, (N_NODES, NUMP), jnp.float32)
    cat_prop = jax.random.normal(k_cp, (N_NODES, CATP), jnp.float32)
    edge_index = jnp.stack([
        jax.random.randint(k_src, (N_EDGES,), 0, N_NODES, jnp.int32),
        jax.random.randint(k_dst, (N_EDGES,), 0, N_NODES, jnp.int32),
    ])                                                   # (2, E)
    edge_type = jax.random.randint(k_et, (N_EDGES,), 0, 2, jnp.int32)

    fwd = jax.jit(drgcn_8layers_forward)
    out = fwd(params, des, tweet, num_prop, cat_prop, edge_index, edge_type)
    out = jax.block_until_ready(out)

    assert out.shape == (N_NODES, 2) and out.dtype == jnp.float32
    assert bool(jnp.all(jnp.isfinite(out)))
    print("KERNEL_OK")
</pallas_src>

<mosaic_0001>
module attributes {stable_mosaic.version = 11 : i64} {
  func.func @_drgcn_fused_kernel(%arg0: memref<64x1664xf32, #tpu.memory_space<vmem>>, %arg1: memref<1664x128xf32, #tpu.memory_space<vmem>>, %arg2: memref<1x128xf32, #tpu.memory_space<vmem>>, %arg3: memref<128x128xf32, #tpu.memory_space<vmem>>, %arg4: memref<1x128xf32, #tpu.memory_space<vmem>>, %arg5: memref<64x128xf32, #tpu.memory_space<vmem>>, %arg6: memref<128x384xf32, #tpu.memory_space<vmem>>, %arg7: memref<1x128xf32, #tpu.memory_space<vmem>>, %arg8: memref<128x128xf32, #tpu.memory_space<vmem>>, %arg9: memref<1x128xf32, #tpu.memory_space<vmem>>, %arg10: memref<128x128xf32, #tpu.memory_space<vmem>>, %arg11: memref<1x128xf32, #tpu.memory_space<vmem>>, %arg12: memref<64x128xf32, #tpu.memory_space<vmem>>) attributes {dimension_semantics = [], scalar_prefetch = 0 : i64, scratch_operands = 0 : i64, tpu.core_type = #tpu.core_type<tc>} {
    %c0 = arith.constant 0 : index
    %c0_0 = arith.constant 0 : index
    %0 = vector.load %arg0[%c0, %c0_0] : memref<64x1664xf32, #tpu.memory_space<vmem>>, vector<64x1664xf32>
    %c0_1 = arith.constant 0 : index
    %c0_2 = arith.constant 0 : index
    %1 = vector.load %arg1[%c0_1, %c0_2] : memref<1664x128xf32, #tpu.memory_space<vmem>>, vector<1664x128xf32>
    %cst = arith.constant dense<0.000000e+00> : vector<64x128xf32>
    %2 = tpu.matmul %0, %1, %cst {dimension_numbers = #tpu.dot_dimension_numbers<[1], [0], [0], [1], [0, 0, 1, 1], [], []>} : vector<64x1664xf32>, vector<1664x128xf32>, vector<64x128xf32> -> vector<64x128xf32>
    %c0_3 = arith.constant 0 : index
    %c0_4 = arith.constant 0 : index
    %3 = vector.load %arg2[%c0_3, %c0_4] : memref<1x128xf32, #tpu.memory_space<vmem>>, vector<1x128xf32>
    %4 = vector.broadcast %3 : vector<1x128xf32> to vector<64x128xf32>
    %5 = arith.addf %2, %4 : vector<64x128xf32>
    %cst_5 = arith.constant 0.000000e+00 : f32
    %6 = vector.broadcast %cst_5 : f32 to vector<64x128xf32>
    %7 = arith.cmpf ogt, %5, %6 : vector<64x128xf32>
    %cst_6 = arith.constant 0.00999999977 : f32
    %8 = vector.broadcast %cst_6 : f32 to vector<64x128xf32>
    %9 = arith.mulf %8, %5 : vector<64x128xf32>
    %10 = arith.select %7, %5, %9 : vector<64x128xi1>, vector<64x128xf32>
    %c0_7 = arith.constant 0 : index
    %c0_8 = arith.constant 0 : index
    %11 = vector.load %arg3[%c0_7, %c0_8] : memref<128x128xf32, #tpu.memory_space<vmem>>, vector<128x128xf32>
    %cst_9 = arith.constant dense<0.000000e+00> : vector<64x128xf32>
    %12 = tpu.matmul %10, %11, %cst_9 {dimension_numbers = #tpu.dot_dimension_numbers<[1], [0], [0], [1], [0, 0, 1, 1], [], []>} : vector<64x128xf32>, vector<128x128xf32>, vector<64x128xf32> -> vector<64x128xf32>
    %c0_10 = arith.constant 0 : index
    %c0_11 = arith.constant 0 : index
    %13 = vector.load %arg4[%c0_10, %c0_11] : memref<1x128xf32, #tpu.memory_space<vmem>>, vector<1x128xf32>
    %14 = vector.broadcast %13 : vector<1x128xf32> to vector<64x128xf32>
    %15 = arith.addf %12, %14 : vector<64x128xf32>
    %cst_12 = arith.constant 0.000000e+00 : f32
    %16 = vector.broadcast %cst_12 : f32 to vector<64x128xf32>
    %17 = arith.cmpf ogt, %15, %16 : vector<64x128xf32>
    %cst_13 = arith.constant 0.00999999977 : f32
    %18 = vector.broadcast %cst_13 : f32 to vector<64x128xf32>
    %19 = arith.mulf %18, %15 : vector<64x128xf32>
    %20 = arith.select %17, %15, %19 : vector<64x128xi1>, vector<64x128xf32>
    %c0_14 = arith.constant 0 : index
    %c0_15 = arith.constant 0 : index
    %21 = vector.load %arg5[%c0_14, %c0_15] : memref<64x128xf32, #tpu.memory_space<vmem>>, vector<64x128xf32>
    %c0_16 = arith.constant 0 : index
    %c0_17 = arith.constant 0 : index
    %22 = vector.load %arg6[%c0_16, %c0_17] : memref<128x384xf32, #tpu.memory_space<vmem>>, vector<128x384xf32>
    %c0_18 = arith.constant 0 : index
    %c0_19 = arith.constant 0 : index
    %23 = vector.load %arg7[%c0_18, %c0_19] : memref<1x128xf32, #tpu.memory_space<vmem>>, vector<1x128xf32>
    %24 = vector.shape_cast %23 : vector<1x128xf32> to vector<1x128xf32>
    %25 = vector.broadcast %24 : vector<1x128xf32> to vector<64x128xf32>
    %c0_i32 = arith.constant 0 : i32
    %cst_20 = arith.constant dense<0.000000e+00> : vector<64x384xf32>
    %26 = tpu.matmul %20, %22, %cst_20 {dimension_numbers = #tpu.dot_dimension_numbers<[1], [0], [0], [1], [0, 0, 1, 1], [], []>} : vector<64x128xf32>, vector<128x384xf32>, vector<64x384xf32> -> vector<64x384xf32>
    %27 = vector.extract_strided_slice %26 {offsets = [0, 128], sizes = [64, 128], strides = [1, 1]} : vector<64x384xf32> to vector<64x128xf32>
    %28 = vector.extract_strided_slice %26 {offsets = [0, 256], sizes = [64, 128], strides = [1, 1]} : vector<64x384xf32> to vector<64x128xf32>
    %29 = tpu.concatenate %27, %28 in 0 : vector<64x128xf32>, vector<64x128xf32> -> vector<128x128xf32>
    %cst_21 = arith.constant dense<0.000000e+00> : vector<64x128xf32>
    %30 = tpu.matmul %21, %29, %cst_21 {dimension_numbers = #tpu.dot_dimension_numbers<[1], [0], [0], [1], [0, 0, 1, 1], [], []>} : vector<64x128xf32>, vector<128x128xf32>, vector<64x128xf32> -> vector<64x128xf32>
    %31 = vector.extract_strided_slice %26 {offsets = [0, 0], sizes = [64, 128], strides = [1, 1]} : vector<64x384xf32> to vector<64x128xf32>
    %32 = arith.addf %31, %30 : vector<64x128xf32>
    %33 = arith.addf %32, %25 : vector<64x128xf32>
    %c1_i32 = arith.constant 1 : i32
    %cst_22 = arith.constant dense<0.000000e+00> : vector<64x384xf32>
    %34 = tpu.matmul %33, %22, %cst_22 {dimension_numbers = #tpu.dot_dimension_numbers<[1], [0], [0], [1], [0, 0, 1, 1], [], []>} : vector<64x128xf32>, vector<128x384xf32>, vector<64x384xf32> -> vector<64x384xf32>
    %35 = vector.extract_strided_slice %34 {offsets = [0, 128], sizes = [64, 128], strides = [1, 1]} : vector<64x384xf32> to vector<64x128xf32>
    %36 = vector.extract_strided_slice %34 {offsets = [0, 256], sizes = [64, 128], strides = [1, 1]} : vector<64x384xf32> to vector<64x128xf32>
    %37 = tpu.concatenate %35, %36 in 0 : vector<64x128xf32>, vector<64x128xf32> -> vector<128x128xf32>
    %cst_23 = arith.constant dense<0.000000e+00> : vector<64x128xf32>
    %38 = tpu.matmul %21, %37, %cst_23 {dimension_numbers = #tpu.dot_dimension_numbers<[1], [0], [0], [1], [0, 0, 1, 1], [], []>} : vector<64x128xf32>, vector<128x128xf32>, vector<64x128xf32> -> vector<64x128xf32>
    %39 = vector.extract_strided_slice %34 {offsets = [0, 0], sizes = [64, 128], strides = [1, 1]} : vector<64x384xf32> to vector<64x128xf32>
    %40 = arith.addf %39, %38 : vector<64x128xf32>
    %41 = arith.addf %40, %25 : vector<64x128xf32>
    %c2_i32 = arith.constant 2 : i32
    %cst_24 = arith.constant dense<0.000000e+00> : vector<64x384xf32>
    %42 = tpu.matmul %41, %22, %cst_24 {dimension_numbers = #tpu.dot_dimension_numbers<[1], [0], [0], [1], [0, 0, 1, 1], [], []>} : vector<64x128xf32>, vector<128x384xf32>, vector<64x384xf32> -> vector<64x384xf32>
    %43 = vector.extract_strided_slice %42 {offsets = [0, 128], sizes = [64, 128], strides = [1, 1]} : vector<64x384xf32> to vector<64x128xf32>
    %44 = vector.extract_strided_slice %42 {offsets = [0, 256], sizes = [64, 128], strides = [1, 1]} : vector<64x384xf32> to vector<64x128xf32>
    %45 = tpu.concatenate %43, %44 in 0 : vector<64x128xf32>, vector<64x128xf32> -> vector<128x128xf32>
    %cst_25 = arith.constant dense<0.000000e+00> : vector<64x128xf32>
    %46 = tpu.matmul %21, %45, %cst_25 {dimension_numbers = #tpu.dot_dimension_numbers<[1], [0], [0], [1], [0, 0, 1, 1], [], []>} : vector<64x128xf32>, vector<128x128xf32>, vector<64x128xf32> -> vector<64x128xf32>
    %47 = vector.extract_strided_slice %42 {offsets = [0, 0], sizes = [64, 128], strides = [1, 1]} : vector<64x384xf32> to vector<64x128xf32>
    %48 = arith.addf %47, %46 : vector<64x128xf32>
    %49 = arith.addf %48, %25 : vector<64x128xf32>
    %c3_i32 = arith.constant 3 : i32
    %cst_26 = arith.constant dense<0.000000e+00> : vector<64x384xf32>
    %50 = tpu.matmul %49, %22, %cst_26 {dimension_numbers = #tpu.dot_dimension_numbers<[1], [0], [0], [1], [0, 0, 1, 1], [], []>} : vector<64x128xf32>, vector<128x384xf32>, vector<64x384xf32> -> vector<64x384xf32>
    %51 = vector.extract_strided_slice %50 {offsets = [0, 128], sizes = [64, 128], strides = [1, 1]} : vector<64x384xf32> to vector<64x128xf32>
    %52 = vector.extract_strided_slice %50 {offsets = [0, 256], sizes = [64, 128], strides = [1, 1]} : vector<64x384xf32> to vector<64x128xf32>
    %53 = tpu.concatenate %51, %52 in 0 : vector<64x128xf32>, vector<64x128xf32> -> vector<128x128xf32>
    %cst_27 = arith.constant dense<0.000000e+00> : vector<64x128xf32>
    %54 = tpu.matmul %21, %53, %cst_27 {dimension_numbers = #tpu.dot_dimension_numbers<[1], [0], [0], [1], [0, 0, 1, 1], [], []>} : vector<64x128xf32>, vector<128x128xf32>, vector<64x128xf32> -> vector<64x128xf32>
    %55 = vector.extract_strided_slice %50 {offsets = [0, 0], sizes = [64, 128], strides = [1, 1]} : vector<64x384xf32> to vector<64x128xf32>
    %56 = arith.addf %55, %54 : vector<64x128xf32>
    %57 = arith.addf %56, %25 : vector<64x128xf32>
    %c4_i32 = arith.constant 4 : i32
    %cst_28 = arith.constant dense<0.000000e+00> : vector<64x384xf32>
    %58 = tpu.matmul %57, %22, %cst_28 {dimension_numbers = #tpu.dot_dimension_numbers<[1], [0], [0], [1], [0, 0, 1, 1], [], []>} : vector<64x128xf32>, vector<128x384xf32>, vector<64x384xf32> -> vector<64x384xf32>
    %59 = vector.extract_strided_slice %58 {offsets = [0, 128], sizes = [64, 128], strides = [1, 1]} : vector<64x384xf32> to vector<64x128xf32>
    %60 = vector.extract_strided_slice %58 {offsets = [0, 256], sizes = [64, 128], strides = [1, 1]} : vector<64x384xf32> to vector<64x128xf32>
    %61 = tpu.concatenate %59, %60 in 0 : vector<64x128xf32>, vector<64x128xf32> -> vector<128x128xf32>
    %cst_29 = arith.constant dense<0.000000e+00> : vector<64x128xf32>
    %62 = tpu.matmul %21, %61, %cst_29 {dimension_numbers = #tpu.dot_dimension_numbers<[1], [0], [0], [1], [0, 0, 1, 1], [], []>} : vector<64x128xf32>, vector<128x128xf32>, vector<64x128xf32> -> vector<64x128xf32>
    %63 = vector.extract_strided_slice %58 {offsets = [0, 0], sizes = [64, 128], strides = [1, 1]} : vector<64x384xf32> to vector<64x128xf32>
    %64 = arith.addf %63, %62 : vector<64x128xf32>
    %65 = arith.addf %64, %25 : vector<64x128xf32>
    %c5_i32 = arith.constant 5 : i32
    %cst_30 = arith.constant dense<0.000000e+00> : vector<64x384xf32>
    %66 = tpu.matmul %65, %22, %cst_30 {dimension_numbers = #tpu.dot_dimension_numbers<[1], [0], [0], [1], [0, 0, 1, 1], [], []>} : vector<64x128xf32>, vector<128x384xf32>, vector<64x384xf32> -> vector<64x384xf32>
    %67 = vector.extract_strided_slice %66 {offsets = [0, 128], sizes = [64, 128], strides = [1, 1]} : vector<64x384xf32> to vector<64x128xf32>
    %68 = vector.extract_strided_slice %66 {offsets = [0, 256], sizes = [64, 128], strides = [1, 1]} : vector<64x384xf32> to vector<64x128xf32>
    %69 = tpu.concatenate %67, %68 in 0 : vector<64x128xf32>, vector<64x128xf32> -> vector<128x128xf32>
    %cst_31 = arith.constant dense<0.000000e+00> : vector<64x128xf32>
    %70 = tpu.matmul %21, %69, %cst_31 {dimension_numbers = #tpu.dot_dimension_numbers<[1], [0], [0], [1], [0, 0, 1, 1], [], []>} : vector<64x128xf32>, vector<128x128xf32>, vector<64x128xf32> -> vector<64x128xf32>
    %71 = vector.extract_strided_slice %66 {offsets = [0, 0], sizes = [64, 128], strides = [1, 1]} : vector<64x384xf32> to vector<64x128xf32>
    %72 = arith.addf %71, %70 : vector<64x128xf32>
    %73 = arith.addf %72, %25 : vector<64x128xf32>
    %c6_i32 = arith.constant 6 : i32
    %cst_32 = arith.constant dense<0.000000e+00> : vector<64x384xf32>
    %74 = tpu.matmul %73, %22, %cst_32 {dimension_numbers = #tpu.dot_dimension_numbers<[1], [0], [0], [1], [0, 0, 1, 1], [], []>} : vector<64x128xf32>, vector<128x384xf32>, vector<64x384xf32> -> vector<64x384xf32>
    %75 = vector.extract_strided_slice %74 {offsets = [0, 128], sizes = [64, 128], strides = [1, 1]} : vector<64x384xf32> to vector<64x128xf32>
    %76 = vector.extract_strided_slice %74 {offsets = [0, 256], sizes = [64, 128], strides = [1, 1]} : vector<64x384xf32> to vector<64x128xf32>
    %77 = tpu.concatenate %75, %76 in 0 : vector<64x128xf32>, vector<64x128xf32> -> vector<128x128xf32>
    %cst_33 = arith.constant dense<0.000000e+00> : vector<64x128xf32>
    %78 = tpu.matmul %21, %77, %cst_33 {dimension_numbers = #tpu.dot_dimension_numbers<[1], [0], [0], [1], [0, 0, 1, 1], [], []>} : vector<64x128xf32>, vector<128x128xf32>, vector<64x128xf32> -> vector<64x128xf32>
    %79 = vector.extract_strided_slice %74 {offsets = [0, 0], sizes = [64, 128], strides = [1, 1]} : vector<64x384xf32> to vector<64x128xf32>
    %80 = arith.addf %79, %78 : vector<64x128xf32>
    %81 = arith.addf %80, %25 : vector<64x128xf32>
    %c7_i32 = arith.constant 7 : i32
    %cst_34 = arith.constant dense<0.000000e+00> : vector<64x384xf32>
    %82 = tpu.matmul %81, %22, %cst_34 {dimension_numbers = #tpu.dot_dimension_numbers<[1], [0], [0], [1], [0, 0, 1, 1], [], []>} : vector<64x128xf32>, vector<128x384xf32>, vector<64x384xf32> -> vector<64x384xf32>
    %83 = vector.extract_strided_slice %82 {offsets = [0, 128], sizes = [64, 128], strides = [1, 1]} : vector<64x384xf32> to vector<64x128xf32>
    %84 = vector.extract_strided_slice %82 {offsets = [0, 256], sizes = [64, 128], strides = [1, 1]} : vector<64x384xf32> to vector<64x128xf32>
    %85 = tpu.concatenate %83, %84 in 0 : vector<64x128xf32>, vector<64x128xf32> -> vector<128x128xf32>
    %cst_35 = arith.constant dense<0.000000e+00> : vector<64x128xf32>
    %86 = tpu.matmul %21, %85, %cst_35 {dimension_numbers = #tpu.dot_dimension_numbers<[1], [0], [0], [1], [0, 0, 1, 1], [], []>} : vector<64x128xf32>, vector<128x128xf32>, vector<64x128xf32> -> vector<64x128xf32>
    %87 = vector.extract_strided_slice %82 {offsets = [0, 0], sizes = [64, 128], strides = [1, 1]} : vector<64x384xf32> to vector<64x128xf32>
    %88 = arith.addf %87, %86 : vector<64x128xf32>
    %89 = arith.addf %88, %25 : vector<64x128xf32>
    %c0_36 = arith.constant 0 : index
    %c0_37 = arith.constant 0 : index
    %90 = vector.load %arg8[%c0_36, %c0_37] : memref<128x128xf32, #tpu.memory_space<vmem>>, vector<128x128xf32>
    %cst_38 = arith.constant dense<0.000000e+00> : vector<64x128xf32>
    %91 = tpu.matmul %89, %90, %cst_38 {dimension_numbers = #tpu.dot_dimension_numbers<[1], [0], [0], [1], [0, 0, 1, 1], [], []>} : vector<64x128xf32>, vector<128x128xf32>, vector<64x128xf32> -> vector<64x128xf32>
    %c0_39 = arith.constant 0 : index
    %c0_40 = arith.constant 0 : index
    %92 = vector.load %arg9[%c0_39, %c0_40] : memref<1x128xf32, #tpu.memory_space<vmem>>, vector<1x128xf32>
    %93 = vector.broadcast %92 : vector<1x128xf32> to vector<64x128xf32>
    %94 = arith.addf %91, %93 : vector<64x128xf32>
    %cst_41 = arith.constant 0.000000e+00 : f32
    %95 = vector.broadcast %cst_41 : f32 to vector<64x128xf32>
    %96 = arith.cmpf ogt, %94, %95 : vector<64x128xf32>
    %cst_42 = arith.constant 0.00999999977 : f32
    %97 = vector.broadcast %cst_42 : f32 to vector<64x128xf32>
    %98 = arith.mulf %97, %94 : vector<64x128xf32>
    %99 = arith.select %96, %94, %98 : vector<64x128xi1>, vector<64x128xf32>
    %c0_43 = arith.constant 0 : index
    %c0_44 = arith.constant 0 : index
    %100 = vector.load %arg10[%c0_43, %c0_44] : memref<128x128xf32, #tpu.memory_space<vmem>>, vector<128x128xf32>
    %cst_45 = arith.constant dense<0.000000e+00> : vector<64x128xf32>
    %101 = tpu.matmul %99, %100, %cst_45 {dimension_numbers = #tpu.dot_dimension_numbers<[1], [0], [0], [1], [0, 0, 1, 1], [], []>} : vector<64x128xf32>, vector<128x128xf32>, vector<64x128xf32> -> vector<64x128xf32>
    %c0_46 = arith.constant 0 : index
    %c0_47 = arith.constant 0 : index
    %102 = vector.load %arg11[%c0_46, %c0_47] : memref<1x128xf32, #tpu.memory_space<vmem>>, vector<1x128xf32>
    %103 = vector.broadcast %102 : vector<1x128xf32> to vector<64x128xf32>
    %104 = arith.addf %101, %103 : vector<64x128xf32>
    %c0_48 = arith.constant 0 : index
    %c0_49 = arith.constant 0 : index
    %105 = vector.load %arg12[%c0_48, %c0_49] : memref<64x128xf32, #tpu.memory_space<vmem>>, vector<64x128xf32>
    tpu.vector_store %arg12[%c0_48, %c0_49], %104 {strides = array<i32>} : memref<64x128xf32, #tpu.memory_space<vmem>>, vector<64x128xf32>,
    return
  }
}

</mosaic_0001>

<llo_original>
// kernel: drgcn_8layers_forward.1
$region0: #{drgcn_8layers_forward.1}
  #allocation0 [shape = 'u32[]', space=smem, size = 0x4, offset = 0x4, fixed_abs, tag = 'smem constant byte address 0x4 - core index']
  #allocation1 [shape = 'u32[72,128]{1,0:T(1,128)}', space=vmem, size = 0x9000, scoped, tag = 'internal scratch']
  %s0 = inlined_call_operand.vmem [shape: f32[64,1664], index: 0, kind: input, shape index: {}]
  %s1 = inlined_call_operand.vmem [shape: f32[1664,128], index: 1, kind: input, shape index: {}]
  %s2 = inlined_call_operand.vmem [shape: f32[1,128], index: 2, kind: input, shape index: {}]
  %s3 = inlined_call_operand.vmem [shape: f32[128,128], index: 3, kind: input, shape index: {}]
  %s4 = inlined_call_operand.vmem [shape: f32[1,128], index: 4, kind: input, shape index: {}]
  %s5 = inlined_call_operand.vmem [shape: f32[64,128], index: 5, kind: input, shape index: {}]
  %s6 = inlined_call_operand.vmem [shape: f32[128,384], index: 6, kind: input, shape index: {}]
  %s7 = inlined_call_operand.vmem [shape: f32[1,128], index: 7, kind: input, shape index: {}]
  %s8 = inlined_call_operand.vmem [shape: f32[128,128], index: 8, kind: input, shape index: {}]
  %s9 = inlined_call_operand.vmem [shape: f32[1,128], index: 9, kind: input, shape index: {}]
  %s10 = inlined_call_operand.vmem [shape: f32[128,128], index: 10, kind: input, shape index: {}]
  %s11 = inlined_call_operand.vmem [shape: f32[1,128], index: 11, kind: input, shape index: {}]
  %s12 = inlined_call_operand.vmem [shape: f32[64,128], index: 12, kind: output, shape index: {}]
  %s13 = sld [smem:[#allocation0]]
  $region58: #{drgcn_8layers_forward.1} parent=0
    _
  %s15 = ssub.s32 1, %s13
  %s16 = scalar_select 0, %s15, %s13
  // Predicated region
  $region2: #{drgcn_8layers_forward.1} parent=0 // pred_check
    _
  $region3: #{drgcn_8layers_forward.1} parent=0 // pred_check_branch
    %18 = sbr.rel (0) target = $region5
  $region4: #{drgcn_8layers_forward.1} parent=0 // pred_region
    _
  $region5: #{drgcn_8layers_forward.1} parent=0 // pred_fallthru
    _
  // Predicated region
  $region6: #{drgcn_8layers_forward.1} parent=0 // pred_check
    _
  $region7: #{drgcn_8layers_forward.1} parent=0 // pred_check_branch
    %20 = sbr.rel (0) target = $region9
  $region8: #{drgcn_8layers_forward.1} parent=0 // pred_region
    _
  $region9: #{drgcn_8layers_forward.1} parent=0 // pred_fallthru
    _
  // Predicated region
  $region10: #{drgcn_8layers_forward.1} parent=0 // pred_check
    _
  $region11: #{drgcn_8layers_forward.1} parent=0 // pred_check_branch
    %22 = sbr.rel (0) target = $region13
  $region12: #{drgcn_8layers_forward.1} parent=0 // pred_region
    _
  $region13: #{drgcn_8layers_forward.1} parent=0 // pred_fallthru
    _
  // Predicated region
  $region14: #{drgcn_8layers_forward.1} parent=0 // pred_check
    _
  $region15: #{drgcn_8layers_forward.1} parent=0 // pred_check_branch
    %24 = sbr.rel (0) target = $region17
  $region16: #{drgcn_8layers_forward.1} parent=0 // pred_region
    _
  $region17: #{drgcn_8layers_forward.1} parent=0 // pred_fallthru
    _
  // Predicated region
  $region18: #{drgcn_8layers_forward.1} parent=0 // pred_check
    _
  $region19: #{drgcn_8layers_forward.1} parent=0 // pred_check_branch
    %26 = sbr.rel (0) target = $region21
  $region20: #{drgcn_8layers_forward.1} parent=0 // pred_region
    _
  $region21: #{drgcn_8layers_forward.1} parent=0 // pred_fallthru
    _
  // Predicated region
  $region22: #{drgcn_8layers_forward.1} parent=0 // pred_check
    _
  $region23: #{drgcn_8layers_forward.1} parent=0 // pred_check_branch
    %28 = sbr.rel (0) target = $region25
  $region24: #{drgcn_8layers_forward.1} parent=0 // pred_region
    _
  $region25: #{drgcn_8layers_forward.1} parent=0 // pred_fallthru
    _
  // Predicated region
  $region26: #{drgcn_8layers_forward.1} parent=0 // pred_check
    _
  $region27: #{drgcn_8layers_forward.1} parent=0 // pred_check_branch
    %30 = sbr.rel (0) target = $region29
  $region28: #{drgcn_8layers_forward.1} parent=0 // pred_region
    _
  $region29: #{drgcn_8layers_forward.1} parent=0 // pred_fallthru
    _
  // Predicated region
  $region30: #{drgcn_8layers_forward.1} parent=0 // pred_check
    _
  $region31: #{drgcn_8layers_forward.1} parent=0 // pred_check_branch
    %32 = sbr.rel (0) target = $region33
  $region32: #{drgcn_8layers_forward.1} parent=0 // pred_region
    _
  $region33: #{drgcn_8layers_forward.1} parent=0 // pred_fallthru
    _
  // Predicated region
  $region34: #{drgcn_8layers_forward.1} parent=0 // pred_check
    _
  $region35: #{drgcn_8layers_forward.1} parent=0 // pred_check_branch
    %34 = sbr.rel (0) target = $region37
  $region36: #{drgcn_8layers_forward.1} parent=0 // pred_region
    _
  $region37: #{drgcn_8layers_forward.1} parent=0 // pred_fallthru
    _
  // Predicated region
  $region38: #{drgcn_8layers_forward.1} parent=0 // pred_check
    _
  $region39: #{drgcn_8layers_forward.1} parent=0 // pred_check_branch
    %36 = sbr.rel (0) target = $region41
  $region40: #{drgcn_8layers_forward.1} parent=0 // pred_region
    _
  $region41: #{drgcn_8layers_forward.1} parent=0 // pred_fallthru
    _
  // Predicated region
  $region42: #{drgcn_8layers_forward.1} parent=0 // pred_check
    _
  $region43: #{drgcn_8layers_forward.1} parent=0 // pred_check_branch
    %38 = sbr.rel (0) target = $region45
  $region44: #{drgcn_8layers_forward.1} parent=0 // pred_region
    _
  $region45: #{drgcn_8layers_forward.1} parent=0 // pred_fallthru
    _
  // Predicated region
  $region46: #{drgcn_8layers_forward.1} parent=0 // pred_check
    _
  $region47: #{drgcn_8layers_forward.1} parent=0 // pred_check_branch
    %40 = sbr.rel (0) target = $region49
  $region48: #{drgcn_8layers_forward.1} parent=0 // pred_region
    _
  $region49: #{drgcn_8layers_forward.1} parent=0 // pred_fallthru
    _
  %v41 = vld [vmem:[%s0] sm:$0xff]
  %v42 = vld [vmem:[%s0 + $0x8] sm:$0xff]
  %v43 = vld [vmem:[%s0 + $0x10] sm:$0xff]
  %v44 = vld [vmem:[%s0 + $0x18] sm:$0xff]
  %v45 = vld [vmem:[%s0 + $0x20] sm:$0xff]
  %v46 = vld [vmem:[%s0 + $0x28] sm:$0xff]
  %v47 = vld [vmem:[%s0 + $0x30] sm:$0xff]
  %v48 = vld [vmem:[%s0 + $0x38] sm:$0xff]
  %v49 = vld [vmem:[%s0 + $0x40] sm:$0xff]
  %v50 = vld [vmem:[%s0 + $0x48] sm:$0xff]
  %v51 = vld [vmem:[%s0 + $0x50] sm:$0xff]
  %v52 = vld [vmem:[%s0 + $0x58] sm:$0xff]
  %v53 = vld [vmem:[%s0 + $0x60] sm:$0xff]
  %v54 = vld [vmem:[%s0 + $0x68] sm:$0xff]
  %v55 = vld [vmem:[%s0 + $0x70] sm:$0xff]
  %v56 = vld [vmem:[%s0 + $0x78] sm:$0xff]
  %v57 = vld [vmem:[%s0 + $0x80] sm:$0xff]
  %v58 = vld [vmem:[%s0 + $0x88] sm:$0xff]
  %v59 = vld [vmem:[%s0 + $0x90] sm:$0xff]
  %v60 = vld [vmem:[%s0 + $0x98] sm:$0xff]
  %v61 = vld [vmem:[%s0 + $0xa0] sm:$0xff]
  %v62 = vld [vmem:[%s0 + $0xa8] sm:$0xff]
  %v63 = vld [vmem:[%s0 + $0xb0] sm:$0xff]
  %v64 = vld [vmem:[%s0 + $0xb8] sm:$0xff]
  %v65 = vld [vmem:[%s0 + $0xc0] sm:$0xff]
  %v66 = vld [vmem:[%s0 + $0xc8] sm:$0xff]
  %v67 = vld [vmem:[%s0 + $0xd0] sm:$0xff]
  %v68 = vld [vmem:[%s0 + $0xd8] sm:$0xff]
  %v69 = vld [vmem:[%s0 + $0xe0] sm:$0xff]
  %v70 = vld [vmem:[%s0 + $0xe8] sm:$0xff]
  %v71 = vld [vmem:[%s0 + $0xf0] sm:$0xff]
  %v72 = vld [vmem:[%s0 + $0xf8] sm:$0xff]
  %v73 = vld [vmem:[%s0 + $0x100] sm:$0xff]
  %v74 = vld [vmem:[%s0 + $0x108] sm:$0xff]
  %v75 = vld [vmem:[%s0 + $0x110] sm:$0xff]
  %v76 = vld [vmem:[%s0 + $0x118] sm:$0xff]
  %v77 = vld [vmem:[%s0 + $0x120] sm:$0xff]
  %v78 = vld [vmem:[%s0 + $0x128] sm:$0xff]
  %v79 = vld [vmem:[%s0 + $0x130] sm:$0xff]
  %v80 = vld [vmem:[%s0 + $0x138] sm:$0xff]
  %v81 = vld [vmem:[%s0 + $0x140] sm:$0xff]
  %v82 = vld [vmem:[%s0 + $0x148] sm:$0xff]
  %v83 = vld [vmem:[%s0 + $0x150] sm:$0xff]
  %v84 = vld [vmem:[%s0 + $0x158] sm:$0xff]
  %v85 = vld [vmem:[%s0 + $0x160] sm:$0xff]
  %v86 = vld [vmem:[%s0 + $0x168] sm:$0xff]
  %v87 = vld [vmem:[%s0 + $0x170] sm:$0xff]
  %v88 = vld [vmem:[%s0 + $0x178] sm:$0xff]
  %v89 = vld [vmem:[%s0 + $0x180] sm:$0xff]
  %v90 = vld [vmem:[%s0 + $0x188] sm:$0xff]
  %v91 = vld [vmem:[%s0 + $0x190] sm:$0xff]
  %v92 = vld [vmem:[%s0 + $0x198] sm:$0xff]
  %v93 = vld [vmem:[%s0 + $0x1a0] sm:$0xff]
  %v94 = vld [vmem:[%s0 + $0x1a8] sm:$0xff]
  %v95 = vld [vmem:[%s0 + $0x1b0] sm:$0xff]
  %v96 = vld [vmem:[%s0 + $0x1b8] sm:$0xff]
  %v97 = vld [vmem:[%s0 + $0x1c0] sm:$0xff]
  %v98 = vld [vmem:[%s0 + $0x1c8] sm:$0xff]
  %v99 = vld [vmem:[%s0 + $0x1d0] sm:$0xff]
  %v100 = vld [vmem:[%s0 + $0x1d8] sm:$0xff]
  %v101 = vld [vmem:[%s0 + $0x1e0] sm:$0xff]
  %v102 = vld [vmem:[%s0 + $0x1e8] sm:$0xff]
  %v103 = vld [vmem:[%s0 + $0x1f0] sm:$0xff]
  %v104 = vld [vmem:[%s0 + $0x1f8] sm:$0xff]
  %v105 = vld [vmem:[%s0 + $0x200] sm:$0xff]
  %v106 = vld [vmem:[%s0 + $0x208] sm:$0xff]
  %v107 = vld [vmem:[%s0 + $0x210] sm:$0xff]
  %v108 = vld [vmem:[%s0 + $0x218] sm:$0xff]
  %v109 = vld [vmem:[%s0 + $0x220] sm:$0xff]
  %v110 = vld [vmem:[%s0 + $0x228] sm:$0xff]
  %v111 = vld [vmem:[%s0 + $0x230] sm:$0xff]
  %v112 = vld [vmem:[%s0 + $0x238] sm:$0xff]
  %v113 = vld [vmem:[%s0 + $0x240] sm:$0xff]
  %v114 = vld [vmem:[%s0 + $0x248] sm:$0xff]
  %v115 = vld [vmem:[%s0 + $0x250] sm:$0xff]
  %v116 = vld [vmem:[%s0 + $0x258] sm:$0xff]
  %v117 = vld [vmem:[%s0 + $0x260] sm:$0xff]
  %v118 = vld [vmem:[%s0 + $0x268] sm:$0xff]
  %v119 = vld [vmem:[%s0 + $0x270] sm:$0xff]
  %v120 = vld [vmem:[%s0 + $0x278] sm:$0xff]
  %v121 = vld [vmem:[%s0 + $0x280] sm:$0xff]
  %v122 = vld [vmem:[%s0 + $0x288] sm:$0xff]
  %v123 = vld [vmem:[%s0 + $0x290] sm:$0xff]
  %v124 = vld [vmem:[%s0 + $0x298] sm:$0xff]
  %v125 = vld [vmem:[%s0 + $0x2a0] sm:$0xff]
  %v126 = vld [vmem:[%s0 + $0x2a8] sm:$0xff]
  %v127 = vld [vmem:[%s0 + $0x2b0] sm:$0xff]
  %v128 = vld [vmem:[%s0 + $0x2b8] sm:$0xff]
  %v129 = vld [vmem:[%s0 + $0x2c0] sm:$0xff]
  %v130 = vld [vmem:[%s0 + $0x2c8] sm:$0xff]
  %v131 = vld [vmem:[%s0 + $0x2d0] sm:$0xff]
  %v132 = vld [vmem:[%s0 + $0x2d8] sm:$0xff]
  %v133 = vld [vmem:[%s0 + $0x2e0] sm:$0xff]
  %v134 = vld [vmem:[%s0 + $0x2e8] sm:$0xff]
  %v135 = vld [vmem:[%s0 + $0x2f0] sm:$0xff]
  %v136 = vld [vmem:[%s0 + $0x2f8] sm:$0xff]
  %v137 = vld [vmem:[%s0 + $0x300] sm:$0xff]
  %v138 = vld [vmem:[%s0 + $0x308] sm:$0xff]
  %v139 = vld [vmem:[%s0 + $0x310] sm:$0xff]
  %v140 = vld [vmem:[%s0 + $0x318] sm:$0xff]
  %v141 = vld [vmem:[%s0 + $0x320] sm:$0xff]
  %v142 = vld [vmem:[%s0 + $0x328] sm:$0xff]
  %v143 = vld [vmem:[%s0 + $0x330] sm:$0xff]
  %v144 = vld [vmem:[%s0 + $0x338] sm:$0xff]
  %v145 = vld [vmem:[%s1] sm:$0xff]
  %v146 = vld [vmem:[%s1 + $0x8] sm:$0xff]
  %v147 = vld [vmem:[%s1 + $0x10] sm:$0xff]
  %v148 = vld [vmem:[%s1 + $0x18] sm:$0xff]
  %v149 = vld [vmem:[%s1 + $0x20] sm:$0xff]
  %v150 = vld [vmem:[%s1 + $0x28] sm:$0xff]
  %v151 = vld [vmem:[%s1 + $0x30] sm:$0xff]
  %v152 = vld [vmem:[%s1 + $0x38] sm:$0xff]
  %v153 = vld [vmem:[%s1 + $0x40] sm:$0xff]
  %v154 = vld [vmem:[%s1 + $0x48] sm:$0xff]
  %v155 = vld [vmem:[%s1 + $0x50] sm:$0xff]
  %v156 = vld [vmem:[%s1 + $0x58] sm:$0xff]
  %v157 = vld [vmem:[%s1 + $0x60] sm:$0xff]
  %v158 = vld [vmem:[%s1 + $0x68] sm:$0xff]
  %v159 = vld [vmem:[%s1 + $0x70] sm:$0xff]
  %v160 = vld [vmem:[%s1 + $0x78] sm:$0xff]
  %v161 = vld [vmem:[%s1 + $0x80] sm:$0xff]
  %v162 = vld [vmem:[%s1 + $0x88] sm:$0xff]
  %v163 = vld [vmem:[%s1 + $0x90] sm:$0xff]
  %v164 = vld [vmem:[%s1 + $0x98] sm:$0xff]
  %v165 = vld [vmem:[%s1 + $0xa0] sm:$0xff]
  %v166 = vld [vmem:[%s1 + $0xa8] sm:$0xff]
  %v167 = vld [vmem:[%s1 + $0xb0] sm:$0xff]
  %v168 = vld [vmem:[%s1 + $0xb8] sm:$0xff]
  %v169 = vld [vmem:[%s1 + $0xc0] sm:$0xff]
  %v170 = vld [vmem:[%s1 + $0xc8] sm:$0xff]
  %v171 = vld [vmem:[%s1 + $0xd0] sm:$0xff]
  %v172 = vld [vmem:[%s1 + $0xd8] sm:$0xff]
  %v173 = vld [vmem:[%s1 + $0xe0] sm:$0xff]
  %v174 = vld [vmem:[%s1 + $0xe8] sm:$0xff]
  %v175 = vld [vmem:[%s1 + $0xf0] sm:$0xff]
  %v176 = vld [vmem:[%s1 + $0xf8] sm:$0xff]
  %v177 = vld [vmem:[%s1 + $0x100] sm:$0xff]
  %v178 = vld [vmem:[%s1 + $0x108] sm:$0xff]
  %v179 = vld [vmem:[%s1 + $0x110] sm:$0xff]
  %v180 = vld [vmem:[%s1 + $0x118] sm:$0xff]
  %v181 = vld [vmem:[%s1 + $0x120] sm:$0xff]
  %v182 = vld [vmem:[%s1 + $0x128] sm:$0xff]
  %v183 = vld [vmem:[%s1 + $0x130] sm:$0xff]
  %v184 = vld [vmem:[%s1 + $0x138] sm:$0xff]
  %v185 = vld [vmem:[%s1 + $0x140] sm:$0xff]
  %v186 = vld [vmem:[%s1 + $0x148] sm:$0xff]
  %v187 = vld [vmem:[%s1 + $0x150] sm:$0xff]
  %v188 = vld [vmem:[%s1 + $0x158] sm:$0xff]
  %v189 = vld [vmem:[%s1 + $0x160] sm:$0xff]
  %v190 = vld [vmem:[%s1 + $0x168] sm:$0xff]
  %v191 = vld [vmem:[%s1 + $0x170] sm:$0xff]
  %v192 = vld [vmem:[%s1 + $0x178] sm:$0xff]
  %v193 = vld [vmem:[%s1 + $0x180] sm:$0xff]
  %v194 = vld [vmem:[%s1 + $0x188] sm:$0xff]
  %v195 = vld [vmem:[%s1 + $0x190] sm:$0xff]
  %v196 = vld [vmem:[%s1 + $0x198] sm:$0xff]
  %v197 = vld [vmem:[%s1 + $0x1a0] sm:$0xff]
  %v198 = vld [vmem:[%s1 + $0x1a8] sm:$0xff]
  %v199 = vld [vmem:[%s1 + $0x1b0] sm:$0xff]
  %v200 = vld [vmem:[%s1 + $0x1b8] sm:$0xff]
  %v201 = vld [vmem:[%s1 + $0x1c0] sm:$0xff]
  %v202 = vld [vmem:[%s1 + $0x1c8] sm:$0xff]
  %v203 = vld [vmem:[%s1 + $0x1d0] sm:$0xff]
  %v204 = vld [vmem:[%s1 + $0x1d8] sm:$0xff]
  %v205 = vld [vmem:[%s1 + $0x1e0] sm:$0xff]
  %v206 = vld [vmem:[%s1 + $0x1e8] sm:$0xff]
  %v207 = vld [vmem:[%s1 + $0x1f0] sm:$0xff]
  %v208 = vld [vmem:[%s1 + $0x1f8] sm:$0xff]
  %v209 = vld [vmem:[%s1 + $0x200] sm:$0xff]
  %v210 = vld [vmem:[%s1 + $0x208] sm:$0xff]
  %v211 = vld [vmem:[%s1 + $0x210] sm:$0xff]
  %v212 = vld [vmem:[%s1 + $0x218] sm:$0xff]
  %v213 = vld [vmem:[%s1 + $0x220] sm:$0xff]
  %v214 = vld [vmem:[%s1 + $0x228] sm:$0xff]
  %v215 = vld [vmem:[%s1 + $0x230] sm:$0xff]
  %v216 = vld [vmem:[%s1 + $0x238] sm:$0xff]
  %v217 = vld [vmem:[%s1 + $0x240] sm:$0xff]
  %v218 = vld [vmem:[%s1 + $0x248] sm:$0xff]
  %v219 = vld [vmem:[%s1 + $0x250] sm:$0xff]
  %v220 = vld [vmem:[%s1 + $0x258] sm:$0xff]
  %v221 = vld [vmem:[%s1 + $0x260] sm:$0xff]
  %v222 = vld [vmem:[%s1 + $0x268] sm:$0xff]
  %v223 = vld [vmem:[%s1 + $0x270] sm:$0xff]
  %v224 = vld [vmem:[%s1 + $0x278] sm:$0xff]
  %v225 = vld [vmem:[%s1 + $0x280] sm:$0xff]
  %v226 = vld [vmem:[%s1 + $0x288] sm:$0xff]
  %v227 = vld [vmem:[%s1 + $0x290] sm:$0xff]
  %v228 = vld [vmem:[%s1 + $0x298] sm:$0xff]
  %v229 = vld [vmem:[%s1 + $0x2a0] sm:$0xff]
  %v230 = vld [vmem:[%s1 + $0x2a8] sm:$0xff]
  %v231 = vld [vmem:[%s1 + $0x2b0] sm:$0xff]
  %v232 = vld [vmem:[%s1 + $0x2b8] sm:$0xff]
  %v233 = vld [vmem:[%s1 + $0x2c0] sm:$0xff]
  %v234 = vld [vmem:[%s1 + $0x2c8] sm:$0xff]
  %v235 = vld [vmem:[%s1 + $0x2d0] sm:$0xff]
  %v236 = vld [vmem:[%s1 + $0x2d8] sm:$0xff]
  %v237 = vld [vmem:[%s1 + $0x2e0] sm:$0xff]
  %v238 = vld [vmem:[%s1 + $0x2e8] sm:$0xff]
  %v239 = vld [vmem:[%s1 + $0x2f0] sm:$0xff]
  %v240 = vld [vmem:[%s1 + $0x2f8] sm:$0xff]
  %v241 = vld [vmem:[%s1 + $0x300] sm:$0xff]
  %v242 = vld [vmem:[%s1 + $0x308] sm:$0xff]
  %v243 = vld [vmem:[%s1 + $0x310] sm:$0xff]
  %v244 = vld [vmem:[%s1 + $0x318] sm:$0xff]
  %v245 = vld [vmem:[%s1 + $0x320] sm:$0xff]
  %v246 = vld [vmem:[%s1 + $0x328] sm:$0xff]
  %v247 = vld [vmem:[%s1 + $0x330] sm:$0xff]
  %v248 = vld [vmem:[%s1 + $0x338] sm:$0xff]
  %v249 = vld [vmem:[%s1 + $0x340] sm:$0xff]
  %v250 = vld [vmem:[%s1 + $0x348] sm:$0xff]
  %v251 = vld [vmem:[%s1 + $0x350] sm:$0xff]
  %v252 = vld [vmem:[%s1 + $0x358] sm:$0xff]
  %v253 = vld [vmem:[%s1 + $0x360] sm:$0xff]
  %v254 = vld [vmem:[%s1 + $0x368] sm:$0xff]
  %v255 = vld [vmem:[%s1 + $0x370] sm:$0xff]
  %v256 = vld [vmem:[%s1 + $0x378] sm:$0xff]
  %v257 = vld [vmem:[%s1 + $0x380] sm:$0xff]
  %v258 = vld [vmem:[%s1 + $0x388] sm:$0xff]
  %v259 = vld [vmem:[%s1 + $0x390] sm:$0xff]
  %v260 = vld [vmem:[%s1 + $0x398] sm:$0xff]
  %v261 = vld [vmem:[%s1 + $0x3a0] sm:$0xff]
  %v262 = vld [vmem:[%s1 + $0x3a8] sm:$0xff]
  %v263 = vld [vmem:[%s1 + $0x3b0] sm:$0xff]
  %v264 = vld [vmem:[%s1 + $0x3b8] sm:$0xff]
  %v265 = vld [vmem:[%s1 + $0x3c0] sm:$0xff]
  %v266 = vld [vmem:[%s1 + $0x3c8] sm:$0xff]
  %v267 = vld [vmem:[%s1 + $0x3d0] sm:$0xff]
  %v268 = vld [vmem:[%s1 + $0x3d8] sm:$0xff]
  %v269 = vld [vmem:[%s1 + $0x3e0] sm:$0xff]
  %v270 = vld [vmem:[%s1 + $0x3e8] sm:$0xff]
  %v271 = vld [vmem:[%s1 + $0x3f0] sm:$0xff]
  %v272 = vld [vmem:[%s1 + $0x3f8] sm:$0xff]
  %v273 = vld [vmem:[%s1 + $0x400] sm:$0xff]
  %v274 = vld [vmem:[%s1 + $0x408] sm:$0xff]
  %v275 = vld [vmem:[%s1 + $0x410] sm:$0xff]
  %v276 = vld [vmem:[%s1 + $0x418] sm:$0xff]
  %v277 = vld [vmem:[%s1 + $0x420] sm:$0xff]
  %v278 = vld [vmem:[%s1 + $0x428] sm:$0xff]
  %v279 = vld [vmem:[%s1 + $0x430] sm:$0xff]
  %v280 = vld [vmem:[%s1 + $0x438] sm:$0xff]
  %v281 = vld [vmem:[%s1 + $0x440] sm:$0xff]
  %v282 = vld [vmem:[%s1 + $0x448] sm:$0xff]
  %v283 = vld [vmem:[%s1 + $0x450] sm:$0xff]
  %v284 = vld [vmem:[%s1 + $0x458] sm:$0xff]
  %v285 = vld [vmem:[%s1 + $0x460] sm:$0xff]
  %v286 = vld [vmem:[%s1 + $0x468] sm:$0xff]
  %v287 = vld [vmem:[%s1 + $0x470] sm:$0xff]
  %v288 = vld [vmem:[%s1 + $0x478] sm:$0xff]
  %v289 = vld [vmem:[%s1 + $0x480] sm:$0xff]
  %v290 = vld [vmem:[%s1 + $0x488] sm:$0xff]
  %v291 = vld [vmem:[%s1 + $0x490] sm:$0xff]
  %v292 = vld [vmem:[%s1 + $0x498] sm:$0xff]
  %v293 = vld [vmem:[%s1 + $0x4a0] sm:$0xff]
  %v294 = vld [vmem:[%s1 + $0x4a8] sm:$0xff]
  %v295 = vld [vmem:[%s1 + $0x4b0] sm:$0xff]
  %v296 = vld [vmem:[%s1 + $0x4b8] sm:$0xff]
  %v297 = vld [vmem:[%s1 + $0x4c0] sm:$0xff]
  %v298 = vld [vmem:[%s1 + $0x4c8] sm:$0xff]
  %v299 = vld [vmem:[%s1 + $0x4d0] sm:$0xff]
  %v300 = vld [vmem:[%s1 + $0x4d8] sm:$0xff]
  %v301 = vld [vmem:[%s1 + $0x4e0] sm:$0xff]
  %v302 = vld [vmem:[%s1 + $0x4e8] sm:$0xff]
  %v303 = vld [vmem:[%s1 + $0x4f0] sm:$0xff]
  %v304 = vld [vmem:[%s1 + $0x4f8] sm:$0xff]
  %v305 = vld [vmem:[%s1 + $0x500] sm:$0xff]
  %v306 = vld [vmem:[%s1 + $0x508] sm:$0xff]
  %v307 = vld [vmem:[%s1 + $0x510] sm:$0xff]
  %v308 = vld [vmem:[%s1 + $0x518] sm:$0xff]
  %v309 = vld [vmem:[%s1 + $0x520] sm:$0xff]
  %v310 = vld [vmem:[%s1 + $0x528] sm:$0xff]
  %v311 = vld [vmem:[%s1 + $0x530] sm:$0xff]
  %v312 = vld [vmem:[%s1 + $0x538] sm:$0xff]
  %v313 = vld [vmem:[%s1 + $0x540] sm:$0xff]
  %v314 = vld [vmem:[%s1 + $0x548] sm:$0xff]
  %v315 = vld [vmem:[%s1 + $0x550] sm:$0xff]
  %v316 = vld [vmem:[%s1 + $0x558] sm:$0xff]
  %v317 = vld [vmem:[%s1 + $0x560] sm:$0xff]
  %v318 = vld [vmem:[%s1 + $0x568] sm:$0xff]
  %v319 = vld [vmem:[%s1 + $0x570] sm:$0xff]
  %v320 = vld [vmem:[%s1 + $0x578] sm:$0xff]
  %v321 = vld [vmem:[%s1 + $0x580] sm:$0xff]
  %v322 = vld [vmem:[%s1 + $0x588] sm:$0xff]
  %v323 = vld [vmem:[%s1 + $0x590] sm:$0xff]
  %v324 = vld [vmem:[%s1 + $0x598] sm:$0xff]
  %v325 = vld [vmem:[%s1 + $0x5a0] sm:$0xff]
  %v326 = vld [vmem:[%s1 + $0x5a8] sm:$0xff]
  %v327 = vld [vmem:[%s1 + $0x5b0] sm:$0xff]
  %v328 = vld [vmem:[%s1 + $0x5b8] sm:$0xff]
  %v329 = vld [vmem:[%s1 + $0x5c0] sm:$0xff]
  %v330 = vld [vmem:[%s1 + $0x5c8] sm:$0xff]
  %v331 = vld [vmem:[%s1 + $0x5d0] sm:$0xff]
  %v332 = vld [vmem:[%s1 + $0x5d8] sm:$0xff]
  %v333 = vld [vmem:[%s1 + $0x5e0] sm:$0xff]
  %v334 = vld [vmem:[%s1 + $0x5e8] sm:$0xff]
  %v335 = vld [vmem:[%s1 + $0x5f0] sm:$0xff]
  %v336 = vld [vmem:[%s1 + $0x5f8] sm:$0xff]
  %v337 = vld [vmem:[%s1 + $0x600] sm:$0xff]
  %v338 = vld [vmem:[%s1 + $0x608] sm:$0xff]
  %v339 = vld [vmem:[%s1 + $0x610] sm:$0xff]
  %v340 = vld [vmem:[%s1 + $0x618] sm:$0xff]
  %v341 = vld [vmem:[%s1 + $0x620] sm:$0xff]
  %v342 = vld [vmem:[%s1 + $0x628] sm:$0xff]
  %v343 = vld [vmem:[%s1 + $0x630] sm:$0xff]
  %v344 = vld [vmem:[%s1 + $0x638] sm:$0xff]
  %v345 = vld [vmem:[%s1 + $0x640] sm:$0xff]
  %v346 = vld [vmem:[%s1 + $0x648] sm:$0xff]
  %v347 = vld [vmem:[%s1 + $0x650] sm:$0xff]
  %v348 = vld [vmem:[%s1 + $0x658] sm:$0xff]
  %v349 = vld [vmem:[%s1 + $0x660] sm:$0xff]
  %v350 = vld [vmem:[%s1 + $0x668] sm:$0xff]
  %v351 = vld [vmem:[%s1 + $0x670] sm:$0xff]
  %v352 = vld [vmem:[%s1 + $0x678] sm:$0xff]
  %v353 = vld [vmem:[%s2] sm:$0x1]
  %v355 = vperm.slane %v353, 0
  %357 = vmatpush.msra.mxu0 %v160
  %358 = vmatpush.msra.mxu0 %v159
  %359 = vmatpush.msra.mxu0 %v158
  %360 = vmatpush.msra.mxu0 %v157
  %361 = vmatpush.msra.mxu0 %v156
  %362 = vmatpush.msra.mxu0 %v155
  %363 = vmatpush.msra.mxu0 %v154
  %364 = vmatpush.msra.mxu0 %v153
  %365 = vmatpush.msra.mxu0 %v152
  %366 = vmatpush.msra.mxu0 %v151
  %367 = vmatpush.msra.mxu0 %v150
  %368 = vmatpush.msra.mxu0 %v149
  %369 = vmatpush.msra.mxu0 %v148
  %370 = vmatpush.msra.mxu0 %v147
  %371 = vmatpush.msra.mxu0 %v146
  %372 = vmatpush.msra.mxu0 %v145
  %373 = vmatmul.f32.gmra.mxu0 %v41
  %v374 = vpop.f32.mrf.mxu0
  %v375 = vadd.f32 %v355, %v374
  %376 = vmatmul.f32.gmra.mxu0 %v54
  %v377 = vpop.f32.mrf.mxu0
  %v378 = vadd.f32 %v355, %v377
  %379 = vmatmul.f32.gmra.mxu0 %v67
  %v380 = vpop.f32.mrf.mxu0
  %v381 = vadd.f32 %v355, %v380
  %382 = vmatmul.f32.gmra.mxu0 %v80
  %v383 = vpop.f32.mrf.mxu0
  %v384 = vadd.f32 %v355, %v383
  %385 = vmatmul.f32.gmra.mxu0 %v93
  %v386 = vpop.f32.mrf.mxu0
  %v387 = vadd.f32 %v355, %v386
  %388 = vmatmul.f32.gmra.mxu0 %v106
  %v389 = vpop.f32.mrf.mxu0
  %v390 = vadd.f32 %v355, %v389
  %391 = vmatmul.f32.gmra.mxu0 %v119
  %v392 = vpop.f32.mrf.mxu0
  %v393 = vadd.f32 %v355, %v392
  %394 = vmatmul.f32.gmra.mxu0 %v132
  %v395 = vpop.f32.mrf.mxu0
  %v396 = vadd.f32 %v355, %v395
  %397 = vdwg.mxu0
  %398 = vmatpush.msra.mxu0 %v176
  %399 = vmatpush.msra.mxu0 %v175
  %400 = vmatpush.msra.mxu0 %v174
  %401 = vmatpush.msra.mxu0 %v173
  %402 = vmatpush.msra.mxu0 %v172
  %403 = vmatpush.msra.mxu0 %v171
  %404 = vmatpush.msra.mxu0 %v170
  %405 = vmatpush.msra.mxu0 %v169
  %406 = vmatpush.msra.mxu0 %v168
  %407 = vmatpush.msra.mxu0 %v167
  %408 = vmatpush.msra.mxu0 %v166
  %409 = vmatpush.msra.mxu0 %v165
  %410 = vmatpush.msra.mxu0 %v164
  %411 = vmatpush.msra.mxu0 %v163
  %412 = vmatpush.msra.mxu0 %v162
  %413 = vmatpush.msra.mxu0 %v161
  %414 = vmatmul.f32.gmra.mxu0 %v42
  %v415 = vpop.f32.mrf.mxu0
  %v416 = vadd.f32 %v375, %v415
  %417 = vmatmul.f32.gmra.mxu0 %v55
  %v418 = vpop.f32.mrf.mxu0
  %v419 = vadd.f32 %v378, %v418
  %420 = vmatmul.f32.gmra.mxu0 %v68
  %v421 = vpop.f32.mrf.mxu0
  %v422 = vadd.f32 %v381, %v421
  %423 = vmatmul.f32.gmra.mxu0 %v81
  %v424 = vpop.f32.mrf.mxu0
  %v425 = vadd.f32 %v384, %v424
  %426 = vmatmul.f32.gmra.mxu0 %v94
  %v427 = vpop.f32.mrf.mxu0
  %v428 = vadd.f32 %v387, %v427
  %429 = vmatmul.f32.gmra.mxu0 %v107
  %v430 = vpop.f32.mrf.mxu0
  %v431 = vadd.f32 %v390, %v430
  %432 = vmatmul.f32.gmra.mxu0 %v120
  %v433 = vpop.f32.mrf.mxu0
  %v434 = vadd.f32 %v393, %v433
  %435 = vmatmul.f32.gmra.mxu0 %v133
  %v436 = vpop.f32.mrf.mxu0
  %v437 = vadd.f32 %v396, %v436
  %438 = vdwg.mxu0
  %439 = vmatpush.msra.mxu0 %v192
  %440 = vmatpush.msra.mxu0 %v191
  %441 = vmatpush.msra.mxu0 %v190
  %442 = vmatpush.msra.mxu0 %v189
  %443 = vmatpush.msra.mxu0 %v188
  %444 = vmatpush.msra.mxu0 %v187
  %445 = vmatpush.msra.mxu0 %v186
  %446 = vmatpush.msra.mxu0 %v185
  %447 = vmatpush.msra.mxu0 %v184
  %448 = vmatpush.msra.mxu0 %v183
  %449 = vmatpush.msra.mxu0 %v182
  %450 = vmatpush.msra.mxu0 %v181
  %451 = vmatpush.msra.mxu0 %v180
  %452 = vmatpush.msra.mxu0 %v179
  %453 = vmatpush.msra.mxu0 %v178
  %454 = vmatpush.msra.mxu0 %v177
  %455 = vmatmul.f32.gmra.mxu0 %v43
  %v456 = vpop.f32.mrf.mxu0
  %v457 = vadd.f32 %v416, %v456
  %458 = vmatmul.f32.gmra.mxu0 %v56
  %v459 = vpop.f32.mrf.mxu0
  %v460 = vadd.f32 %v419, %v459
  %461 = vmatmul.f32.gmra.mxu0 %v69
  %v462 = vpop.f32.mrf.mxu0
  %v463 = vadd.f32 %v422, %v462
  %464 = vmatmul.f32.gmra.mxu0 %v82
  %v465 = vpop.f32.mrf.mxu0
  %v466 = vadd.f32 %v425, %v465
  %467 = vmatmul.f32.gmra.mxu0 %v95
  %v468 = vpop.f32.mrf.mxu0
  %v469 = vadd.f32 %v428, %v468
  %470 = vmatmul.f32.gmra.mxu0 %v108
  %v471 = vpop.f32.mrf.mxu0
  %v472 = vadd.f32 %v431, %v471
  %473 = vmatmul.f32.gmra.mxu0 %v121
  %v474 = vpop.f32.mrf.mxu0
  %v475 = vadd.f32 %v434, %v474
  %476 = vmatmul.f32.gmra.mxu0 %v134
  %v477 = vpop.f32.mrf.mxu0
  %v478 = vadd.f32 %v437, %v477
  %479 = vdwg.mxu0
  %480 = vmatpush.msra.mxu0 %v208
  %481 = vmatpush.msra.mxu0 %v207
  %482 = vmatpush.msra.mxu0 %v206
  %483 = vmatpush.msra.mxu0 %v205
  %484 = vmatpush.msra.mxu0 %v204
  %485 = vmatpush.msra.mxu0 %v203
  %486 = vmatpush.msra.mxu0 %v202
  %487 = vmatpush.msra.mxu0 %v201
  %488 = vmatpush.msra.mxu0 %v200
  %489 = vmatpush.msra.mxu0 %v199
  %490 = vmatpush.msra.mxu0 %v198
  %491 = vmatpush.msra.mxu0 %v197
  %492 = vmatpush.msra.mxu0 %v196
  %493 = vmatpush.msra.mxu0 %v195
  %494 = vmatpush.msra.mxu0 %v194
  %495 = vmatpush.msra.mxu0 %v193
  %496 = vmatmul.f32.gmra.mxu0 %v44
  %v497 = vpop.f32.mrf.mxu0
  %v498 = vadd.f32 %v457, %v497
  %499 = vmatmul.f32.gmra.mxu0 %v57
  %v500 = vpop.f32.mrf.mxu0
  %v501 = vadd.f32 %v460, %v500
  %502 = vmatmul.f32.gmra.mxu0 %v70
  %v503 = vpop.f32.mrf.mxu0
  %v504 = vadd.f32 %v463, %v503
  %505 = vmatmul.f32.gmra.mxu0 %v83
  %v506 = vpop.f32.mrf.mxu0
  %v507 = vadd.f32 %v466, %v506
  %508 = vmatmul.f32.gmra.mxu0 %v96
  %v509 = vpop.f32.mrf.mxu0
  %v510 = vadd.f32 %v469, %v509
  %511 = vmatmul.f32.gmra.mxu0 %v109
  %v512 = vpop.f32.mrf.mxu0
  %v513 = vadd.f32 %v472, %v512
  %514 = vmatmul.f32.gmra.mxu0 %v122
  %v515 = vpop.f32.mrf.mxu0
  %v516 = vadd.f32 %v475, %v515
  %517 = vmatmul.f32.gmra.mxu0 %v135
  %v518 = vpop.f32.mrf.mxu0
  %v519 = vadd.f32 %v478, %v518
  %520 = vdwg.mxu0
  %521 = vmatpush.msra.mxu0 %v224
  %522 = vmatpush.msra.mxu0 %v223
  %523 = vmatpush.msra.mxu0 %v222
  %524 = vmatpush.msra.mxu0 %v221
  %525 = vmatpush.msra.mxu0 %v220
  %526 = vmatpush.msra.mxu0 %v219
  %527 = vmatpush.msra.mxu0 %v218
  %528 = vmatpush.msra.mxu0 %v217
  %529 = vmatpush.msra.mxu0 %v216
  %530 = vmatpush.msra.mxu0 %v215
  %531 = vmatpush.msra.mxu0 %v214
  %532 = vmatpush.msra.mxu0 %v213
  %533 = vmatpush.msra.mxu0 %v212
  %534 = vmatpush.msra.mxu0 %v211
  %535 = vmatpush.msra.mxu0 %v210
  %536 = vmatpush.msra.mxu0 %v209
  %537 = vmatmul.f32.gmra.mxu0 %v45
  %v538 = vpop.f32.mrf.mxu0
  %v539 = vadd.f32 %v498, %v538
  %540 = vmatmul.f32.gmra.mxu0 %v58
  %v541 = vpop.f32.mrf.mxu0
  %v542 = vadd.f32 %v501, %v541
  %543 = vmatmul.f32.gmra.mxu0 %v71
  %v544 = vpop.f32.mrf.mxu0
  %v545 = vadd.f32 %v504, %v544
  %546 = vmatmul.f32.gmra.mxu0 %v84
  %v547 = vpop.f32.mrf.mxu0
  %v548 = vadd.f32 %v507, %v547
  %549 = vmatmul.f32.gmra.mxu0 %v97
  %v550 = vpop.f32.mrf.mxu0
  %v551 = vadd.f32 %v510, %v550
  %552 = vmatmul.f32.gmra.mxu0 %v110
  %v553 = vpop.f32.mrf.mxu0
  %v554 = vadd.f32 %v513, %v553
  %555 = vmatmul.f32.gmra.mxu0 %v123
  %v556 = vpop.f32.mrf.mxu0
  %v557 = vadd.f32 %v516, %v556
  %558 = vmatmul.f32.gmra.mxu0 %v136
  %v559 = vpop.f32.mrf.mxu0
  %v560 = vadd.f32 %v519, %v559
  %561 = vdwg.mxu0
  %562 = vmatpush.msra.mxu0 %v240
  %563 = vmatpush.msra.mxu0 %v239
  %564 = vmatpush.msra.mxu0 %v238
  %565 = vmatpush.msra.mxu0 %v237
  %566 = vmatpush.msra.mxu0 %v236
  %567 = vmatpush.msra.mxu0 %v235
  %568 = vmatpush.msra.mxu0 %v234
  %569 = vmatpush.msra.mxu0 %v233
  %570 = vmatpush.msra.mxu0 %v232
  %571 = vmatpush.msra.mxu0 %v231
  %572 = vmatpush.msra.mxu0 %v230
  %573 = vmatpush.msra.mxu0 %v229
  %574 = vmatpush.msra.mxu0 %v228
  %575 = vmatpush.msra.mxu0 %v227
  %576 = vmatpush.msra.mxu0 %v226
  %577 = vmatpush.msra.mxu0 %v225
  %578 = vmatmul.f32.gmra.mxu0 %v46
  %v579 = vpop.f32.mrf.mxu0
  %v580 = vadd.f32 %v539, %v579
  %581 = vmatmul.f32.gmra.mxu0 %v59
  %v582 = vpop.f32.mrf.mxu0
  %v583 = vadd.f32 %v542, %v582
  %584 = vmatmul.f32.gmra.mxu0 %v72
  %v585 = vpop.f32.mrf.mxu0
  %v586 = vadd.f32 %v545, %v585
  %587 = vmatmul.f32.gmra.mxu0 %v85
  %v588 = vpop.f32.mrf.mxu0
  %v589 = vadd.f32 %v548, %v588
  %590 = vmatmul.f32.gmra.mxu0 %v98
  %v591 = vpop.f32.mrf.mxu0
  %v592 = vadd.f32 %v551, %v591
  %593 = vmatmul.f32.gmra.mxu0 %v111
  %v594 = vpop.f32.mrf.mxu0
  %v595 = vadd.f32 %v554, %v594
  %596 = vmatmul.f32.gmra.mxu0 %v124
  %v597 = vpop.f32.mrf.mxu0
  %v598 = vadd.f32 %v557, %v597
  %599 = vmatmul.f32.gmra.mxu0 %v137
  %v600 = vpop.f32.mrf.mxu0
  %v601 = vadd.f32 %v560, %v600
  %602 = vdwg.mxu0
  %603 = vmatpush.msra.mxu0 %v256
  %604 = vmatpush.msra.mxu0 %v255
  %605 = vmatpush.msra.mxu0 %v254
  %606 = vmatpush.msra.mxu0 %v253
  %607 = vmatpush.msra.mxu0 %v252
  %608 = vmatpush.msra.mxu0 %v251
  %609 = vmatpush.msra.mxu0 %v250
  %610 = vmatpush.msra.mxu0 %v249
  %611 = vmatpush.msra.mxu0 %v248
  %612 = vmatpush.msra.mxu0 %v247
  %613 = vmatpush.msra.mxu0 %v246
  %614 = vmatpush.msra.mxu0 %v245
  %615 = vmatpush.msra.mxu0 %v244
  %616 = vmatpush.msra.mxu0 %v243
  %617 = vmatpush.msra.mxu0 %v242
  %618 = vmatpush.msra.mxu0 %v241
  %619 = vmatmul.f32.gmra.mxu0 %v47
  %v620 = vpop.f32.mrf.mxu0
  %v621 = vadd.f32 %v580, %v620
  %622 = vmatmul.f32.gmra.mxu0 %v60
  %v623 = vpop.f32.mrf.mxu0
  %v624 = vadd.f32 %v583, %v623
  %625 = vmatmul.f32.gmra.mxu0 %v73
  %v626 = vpop.f32.mrf.mxu0
  %v627 = vadd.f32 %v586, %v626
  %628 = vmatmul.f32.gmra.mxu0 %v86
  %v629 = vpop.f32.mrf.mxu0
  %v630 = vadd.f32 %v589, %v629
  %631 = vmatmul.f32.gmra.mxu0 %v99
  %v632 = vpop.f32.mrf.mxu0
  %v633 = vadd.f32 %v592, %v632
  %634 = vmatmul.f32.gmra.mxu0 %v112
  %v635 = vpop.f32.mrf.mxu0
  %v636 = vadd.f32 %v595, %v635
  %637 = vmatmul.f32.gmra.mxu0 %v125
  %v638 = vpop.f32.mrf.mxu0
  %v639 = vadd.f32 %v598, %v638
  %640 = vmatmul.f32.gmra.mxu0 %v138
  %v641 = vpop.f32.mrf.mxu0
  %v642 = vadd.f32 %v601, %v641
  %643 = vdwg.mxu0
  %644 = vmatpush.msra.mxu0 %v272
  %645 = vmatpush.msra.mxu0 %v271
  %646 = vmatpush.msra.mxu0 %v270
  %647 = vmatpush.msra.mxu0 %v269
  %648 = vmatpush.msra.mxu0 %v268
  %649 = vmatpush.msra.mxu0 %v267
  %650 = vmatpush.msra.mxu0 %v266
  %651 = vmatpush.msra.mxu0 %v265
  %652 = vmatpush.msra.mxu0 %v264
  %653 = vmatpush.msra.mxu0 %v263
  %654 = vmatpush.msra.mxu0 %v262
  %655 = vmatpush.msra.mxu0 %v261
  %656 = vmatpush.msra.mxu0 %v260
  %657 = vmatpush.msra.mxu0 %v259
  %658 = vmatpush.msra.mxu0 %v258
  %659 = vmatpush.msra.mxu0 %v257
  %660 = vmatmul.f32.gmra.mxu0 %v48
  %v661 = vpop.f32.mrf.mxu0
  %v662 = vadd.f32 %v621, %v661
  %663 = vmatmul.f32.gmra.mxu0 %v61
  %v664 = vpop.f32.mrf.mxu0
  %v665 = vadd.f32 %v624, %v664
  %666 = vmatmul.f32.gmra.mxu0 %v74
  %v667 = vpop.f32.mrf.mxu0
  %v668 = vadd.f32 %v627, %v667
  %669 = vmatmul.f32.gmra.mxu0 %v87
  %v670 = vpop.f32.mrf.mxu0
  %v671 = vadd.f32 %v630, %v670
  %672 = vmatmul.f32.gmra.mxu0 %v100
  %v673 = vpop.f32.mrf.mxu0
  %v674 = vadd.f32 %v633, %v673
  %675 = vmatmul.f32.gmra.mxu0 %v113
  %v676 = vpop.f32.mrf.mxu0
  %v677 = vadd.f32 %v636, %v676
  %678 = vmatmul.f32.gmra.mxu0 %v126
  %v679 = vpop.f32.mrf.mxu0
  %v680 = vadd.f32 %v639, %v679
  %681 = vmatmul.f32.gmra.mxu0 %v139
  %v682 = vpop.f32.mrf.mxu0
  %v683 = vadd.f32 %v642, %v682
  %684 = vdwg.mxu0
  %685 = vmatpush.msra.mxu0 %v288
  %686 = vmatpush.msra.mxu0 %v287
  %687 = vmatpush.msra.mxu0 %v286
  %688 = vmatpush.msra.mxu0 %v285
  %689 = vmatpush.msra.mxu0 %v284
  %690 = vmatpush.msra.mxu0 %v283
  %691 = vmatpush.msra.mxu0 %v282
  %692 = vmatpush.msra.mxu0 %v281
  %693 = vmatpush.msra.mxu0 %v280
  %694 = vmatpush.msra.mxu0 %v279
  %695 = vmatpush.msra.mxu0 %v278
  %696 = vmatpush.msra.mxu0 %v277
  %697 = vmatpush.msra.mxu0 %v276
  %698 = vmatpush.msra.mxu0 %v275
  %699 = vmatpush.msra.mxu0 %v274
  %700 = vmatpush.msra.mxu0 %v273
  %701 = vmatmul.f32.gmra.mxu0 %v49
  %v702 = vpop.f32.mrf.mxu0
  %v703 = vadd.f32 %v662, %v702
  %704 = vmatmul.f32.gmra.mxu0 %v62
  %v705 = vpop.f32.mrf.mxu0
  %v706 = vadd.f32 %v665, %v705
  %707 = vmatmul.f32.gmra.mxu0 %v75
  %v708 = vpop.f32.mrf.mxu0
  %v709 = vadd.f32 %v668, %v708
  %710 = vmatmul.f32.gmra.mxu0 %v88
  %v711 = vpop.f32.mrf.mxu0
  %v712 = vadd.f32 %v671, %v711
  %713 = vmatmul.f32.gmra.mxu0 %v101
  %v714 = vpop.f32.mrf.mxu0
  %v715 = vadd.f32 %v674, %v714
  %716 = vmatmul.f32.gmra.mxu0 %v114
  %v717 = vpop.f32.mrf.mxu0
  %v718 = vadd.f32 %v677, %v717
  %719 = vmatmul.f32.gmra.mxu0 %v127
  %v720 = vpop.f32.mrf.mxu0
  %v721 = vadd.f32 %v680, %v720
  %722 = vmatmul.f32.gmra.mxu0 %v140
  %v723 = vpop.f32.mrf.mxu0
  %v724 = vadd.f32 %v683, %v723
  %725 = vdwg.mxu0
  %726 = vmatpush.msra.mxu0 %v304
  %727 = vmatpush.msra.mxu0 %v303
  %728 = vmatpush.msra.mxu0 %v302
  %729 = vmatpush.msra.mxu0 %v301
  %730 = vmatpush.msra.mxu0 %v300
  %731 = vmatpush.msra.mxu0 %v299
  %732 = vmatpush.msra.mxu0 %v298
  %733 = vmatpush.msra.mxu0 %v297
  %734 = vmatpush.msra.mxu0 %v296
  %735 = vmatpush.msra.mxu0 %v295
  %736 = vmatpush.msra.mxu0 %v294
  %737 = vmatpush.msra.mxu0 %v293
  %738 = vmatpush.msra.mxu0 %v292
  %739 = vmatpush.msra.mxu0 %v291
  %740 = vmatpush.msra.mxu0 %v290
  %741 = vmatpush.msra.mxu0 %v289
  %742 = vmatmul.f32.gmra.mxu0 %v50
  %v743 = vpop.f32.mrf.mxu0
  %v744 = vadd.f32 %v703, %v743
  %745 = vmatmul.f32.gmra.mxu0 %v63
  %v746 = vpop.f32.mrf.mxu0
  %v747 = vadd.f32 %v706, %v746
  %748 = vmatmul.f32.gmra.mxu0 %v76
  %v749 = vpop.f32.mrf.mxu0
  %v750 = vadd.f32 %v709, %v749
  %751 = vmatmul.f32.gmra.mxu0 %v89
  %v752 = vpop.f32.mrf.mxu0
  %v753 = vadd.f32 %v712, %v752
  %754 = vmatmul.f32.gmra.mxu0 %v102
  %v755 = vpop.f32.mrf.mxu0
  %v756 = vadd.f32 %v715, %v755
  %757 = vmatmul.f32.gmra.mxu0 %v115
  %v758 = vpop.f32.mrf.mxu0
  %v759 = vadd.f32 %v718, %v758
  %760 = vmatmul.f32.gmra.mxu0 %v128
  %v761 = vpop.f32.mrf.mxu0
  %v762 = vadd.f32 %v721, %v761
  %763 = vmatmul.f32.gmra.mxu0 %v141
  %v764 = vpop.f32.mrf.mxu0
  %v765 = vadd.f32 %v724, %v764
  %766 = vdwg.mxu0
  %767 = vmatpush.msra.mxu0 %v320
  %768 = vmatpush.msra.mxu0 %v319
  %769 = vmatpush.msra.mxu0 %v318
  %770 = vmatpush.msra.mxu0 %v317
  %771 = vmatpush.msra.mxu0 %v316
  %772 = vmatpush.msra.mxu0 %v315
  %773 = vmatpush.msra.mxu0 %v314
  %774 = vmatpush.msra.mxu0 %v313
  %775 = vmatpush.msra.mxu0 %v312
  %776 = vmatpush.msra.mxu0 %v311
  %777 = vmatpush.msra.mxu0 %v310
  %778 = vmatpush.msra.mxu0 %v309
  %779 = vmatpush.msra.mxu0 %v308
  %780 = vmatpush.msra.mxu0 %v307
  %781 = vmatpush.msra.mxu0 %v306
  %782 = vmatpush.msra.mxu0 %v305
  %783 = vmatmul.f32.gmra.mxu0 %v51
  %v784 = vpop.f32.mrf.mxu0
  %v785 = vadd.f32 %v744, %v784
  %786 = vmatmul.f32.gmra.mxu0 %v64
  %v787 = vpop.f32.mrf.mxu0
  %v788 = vadd.f32 %v747, %v787
  %789 = vmatmul.f32.gmra.mxu0 %v77
  %v790 = vpop.f32.mrf.mxu0
  %v791 = vadd.f32 %v750, %v790
  %792 = vmatmul.f32.gmra.mxu0 %v90
  %v793 = vpop.f32.mrf.mxu0
  %v794 = vadd.f32 %v753, %v793
  %795 = vmatmul.f32.gmra.mxu0 %v103
  %v796 = vpop.f32.mrf.mxu0
  %v797 = vadd.f32 %v756, %v796
  %798 = vmatmul.f32.gmra.mxu0 %v116
  %v799 = vpop.f32.mrf.mxu0
  %v800 = vadd.f32 %v759, %v799
  %801 = vmatmul.f32.gmra.mxu0 %v129
  %v802 = vpop.f32.mrf.mxu0
  %v803 = vadd.f32 %v762, %v802
  %804 = vmatmul.f32.gmra.mxu0 %v142
  %v805 = vpop.f32.mrf.mxu0
  %v806 = vadd.f32 %v765, %v805
  %807 = vdwg.mxu0
  %808 = vmatpush.msra.mxu0 %v336
  %809 = vmatpush.msra.mxu0 %v335
  %810 = vmatpush.msra.mxu0 %v334
  %811 = vmatpush.msra.mxu0 %v333
  %812 = vmatpush.msra.mxu0 %v332
  %813 = vmatpush.msra.mxu0 %v331
  %814 = vmatpush.msra.mxu0 %v330
  %815 = vmatpush.msra.mxu0 %v329
  %816 = vmatpush.msra.mxu0 %v328
  %817 = vmatpush.msra.mxu0 %v327
  %818 = vmatpush.msra.mxu0 %v326
  %819 = vmatpush.msra.mxu0 %v325
  %820 = vmatpush.msra.mxu0 %v324
  %821 = vmatpush.msra.mxu0 %v323
  %822 = vmatpush.msra.mxu0 %v322
  %823 = vmatpush.msra.mxu0 %v321
  %824 = vmatmul.f32.gmra.mxu0 %v52
  %v825 = vpop.f32.mrf.mxu0
  %v826 = vadd.f32 %v785, %v825
  %827 = vmatmul.f32.gmra.mxu0 %v65
  %v828 = vpop.f32.mrf.mxu0
  %v829 = vadd.f32 %v788, %v828
  %830 = vmatmul.f32.gmra.mxu0 %v78
  %v831 = vpop.f32.mrf.mxu0
  %v832 = vadd.f32 %v791, %v831
  %833 = vmatmul.f32.gmra.mxu0 %v91
  %v834 = vpop.f32.mrf.mxu0
  %v835 = vadd.f32 %v794, %v834
  %836 = vmatmul.f32.gmra.mxu0 %v104
  %v837 = vpop.f32.mrf.mxu0
  %v838 = vadd.f32 %v797, %v837
  %839 = vmatmul.f32.gmra.mxu0 %v117
  %v840 = vpop.f32.mrf.mxu0
  %v841 = vadd.f32 %v800, %v840
  %842 = vmatmul.f32.gmra.mxu0 %v130
  %v843 = vpop.f32.mrf.mxu0
  %v844 = vadd.f32 %v803, %v843
  %845 = vmatmul.f32.gmra.mxu0 %v143
  %v846 = vpop.f32.mrf.mxu0
  %v847 = vadd.f32 %v806, %v846
  %848 = vdwg.mxu0
  %849 = vmatpush.msra.mxu0 %v352
  %850 = vmatpush.msra.mxu0 %v351
  %851 = vmatpush.msra.mxu0 %v350
  %852 = vmatpush.msra.mxu0 %v349
  %853 = vmatpush.msra.mxu0 %v348
  %854 = vmatpush.msra.mxu0 %v347
  %855 = vmatpush.msra.mxu0 %v346
  %856 = vmatpush.msra.mxu0 %v345
  %857 = vmatpush.msra.mxu0 %v344
  %858 = vmatpush.msra.mxu0 %v343
  %859 = vmatpush.msra.mxu0 %v342
  %860 = vmatpush.msra.mxu0 %v341
  %861 = vmatpush.msra.mxu0 %v340
  %862 = vmatpush.msra.mxu0 %v339
  %863 = vmatpush.msra.mxu0 %v338
  %864 = vmatpush.msra.mxu0 %v337
  %865 = vmatmul.f32.gmra.mxu0 %v53
  %v866 = vpop.f32.mrf.mxu0
  %v867 = vadd.f32 %v826, %v866
  %868 = vmatmul.f32.gmra.mxu0 %v66
  %v869 = vpop.f32.mrf.mxu0
  %v870 = vadd.f32 %v829, %v869
  %871 = vmatmul.f32.gmra.mxu0 %v79
  %v872 = vpop.f32.mrf.mxu0
  %v873 = vadd.f32 %v832, %v872
  %874 = vmatmul.f32.gmra.mxu0 %v92
  %v875 = vpop.f32.mrf.mxu0
  %v876 = vadd.f32 %v835, %v875
  %877 = vmatmul.f32.gmra.mxu0 %v105
  %v878 = vpop.f32.mrf.mxu0
  %v879 = vadd.f32 %v838, %v878
  %880 = vmatmul.f32.gmra.mxu0 %v118
  %v881 = vpop.f32.mrf.mxu0
  %v882 = vadd.f32 %v841, %v881
  %883 = vmatmul.f32.gmra.mxu0 %v131
  %v884 = vpop.f32.mrf.mxu0
  %v885 = vadd.f32 %v844, %v884
  %886 = vmatmul.f32.gmra.mxu0 %v144
  %v887 = vpop.f32.mrf.mxu0
  %v888 = vadd.f32 %v847, %v887
  %889 = vdwg.mxu0
  %vm890 = vcmp.gt.f32.partialorder %v867, 0.0
  %vm891 = vcmp.gt.f32.partialorder %v870, 0.0
  %vm892 = vcmp.gt.f32.partialorder %v873, 0.0
  %vm893 = vcmp.gt.f32.partialorder %v876, 0.0
  %vm894 = vcmp.gt.f32.partialorder %v879, 0.0
  %vm895 = vcmp.gt.f32.partialorder %v882, 0.0
  %vm896 = vcmp.gt.f32.partialorder %v885, 0.0
  %vm897 = vcmp.gt.f32.partialorder %v888, 0.0
  %v898 = vmul.f32 %v867, 0.01
  %v899 = vmul.f32 %v870, 0.01
  %v900 = vmul.f32 %v873, 0.01
  %v901 = vmul.f32 %v876, 0.01
  %v902 = vmul.f32 %v879, 0.01
  %v903 = vmul.f32 %v882, 0.01
  %v904 = vmul.f32 %v885, 0.01
  %v905 = vmul.f32 %v888, 0.01
  %v906 = vsel %vm890, %v867, %v898
  %v907 = vsel %vm891, %v870, %v899
  %v908 = vsel %vm892, %v873, %v900
  %v909 = vsel %vm893, %v876, %v901
  %v910 = vsel %vm894, %v879, %v902
  %v911 = vsel %vm895, %v882, %v903
  %v912 = vsel %vm896, %v885, %v904
  %v913 = vsel %vm897, %v888, %v905
  %v914 = vld [vmem:[%s3] sm:$0xff]
  %v915 = vld [vmem:[%s3 + $0x8] sm:$0xff]
  %v916 = vld [vmem:[%s3 + $0x10] sm:$0xff]
  %v917 = vld [vmem:[%s3 + $0x18] sm:$0xff]
  %v918 = vld [vmem:[%s3 + $0x20] sm:$0xff]
  %v919 = vld [vmem:[%s3 + $0x28] sm:$0xff]
  %v920 = vld [vmem:[%s3 + $0x30] sm:$0xff]
  %v921 = vld [vmem:[%s3 + $0x38] sm:$0xff]
  %v922 = vld [vmem:[%s3 + $0x40] sm:$0xff]
  %v923 = vld [vmem:[%s3 + $0x48] sm:$0xff]
  %v924 = vld [vmem:[%s3 + $0x50] sm:$0xff]
  %v925 = vld [vmem:[%s3 + $0x58] sm:$0xff]
  %v926 = vld [vmem:[%s3 + $0x60] sm:$0xff]
  %v927 = vld [vmem:[%s3 + $0x68] sm:$0xff]
  %v928 = vld [vmem:[%s3 + $0x70] sm:$0xff]
  %v929 = vld [vmem:[%s3 + $0x78] sm:$0xff]
  %v930 = vld [vmem:[%s4] sm:$0x1]
  %v932 = vperm.slane %v930, 0
  %934 = vmatpush.msra.mxu0 %v929
  %935 = vmatpush.msra.mxu0 %v928
  %936 = vmatpush.msra.mxu0 %v927
  %937 = vmatpush.msra.mxu0 %v926
  %938 = vmatpush.msra.mxu0 %v925
  %939 = vmatpush.msra.mxu0 %v924
  %940 = vmatpush.msra.mxu0 %v923
  %941 = vmatpush.msra.mxu0 %v922
  %942 = vmatpush.msra.mxu0 %v921
  %943 = vmatpush.msra.mxu0 %v920
  %944 = vmatpush.msra.mxu0 %v919
  %945 = vmatpush.msra.mxu0 %v918
  %946 = vmatpush.msra.mxu0 %v917
  %947 = vmatpush.msra.mxu0 %v916
  %948 = vmatpush.msra.mxu0 %v915
  %949 = vmatpush.msra.mxu0 %v914
  %950 = vmatmul.f32.gmra.mxu0 %v906
  %v951 = vpop.f32.mrf.mxu0
  %v952 = vadd.f32 %v932, %v951
  %953 = vmatmul.f32.gmra.mxu0 %v907
  %v954 = vpop.f32.mrf.mxu0
  %v955 = vadd.f32 %v932, %v954
  %956 = vmatmul.f32.gmra.mxu0 %v908
  %v957 = vpop.f32.mrf.mxu0
  %v958 = vadd.f32 %v932, %v957
  %959 = vmatmul.f32.gmra.mxu0 %v909
  %v960 = vpop.f32.mrf.mxu0
  %v961 = vadd.f32 %v932, %v960
  %962 = vmatmul.f32.gmra.mxu0 %v910
  %v963 = vpop.f32.mrf.mxu0
  %v964 = vadd.f32 %v932, %v963
  %965 = vmatmul.f32.gmra.mxu0 %v911
  %v966 = vpop.f32.mrf.mxu0
  %v967 = vadd.f32 %v932, %v966
  %968 = vmatmul.f32.gmra.mxu0 %v912
  %v969 = vpop.f32.mrf.mxu0
  %v970 = vadd.f32 %v932, %v969
  %971 = vmatmul.f32.gmra.mxu0 %v913
  %v972 = vpop.f32.mrf.mxu0
  %v973 = vadd.f32 %v932, %v972
  %974 = vdwg.mxu0
  %vm975 = vcmp.gt.f32.partialorder %v952, 0.0
  %vm976 = vcmp.gt.f32.partialorder %v955, 0.0
  %vm977 = vcmp.gt.f32.partialorder %v958, 0.0
  %vm978 = vcmp.gt.f32.partialorder %v961, 0.0
  %vm979 = vcmp.gt.f32.partialorder %v964, 0.0
  %vm980 = vcmp.gt.f32.partialorder %v967, 0.0
  %vm981 = vcmp.gt.f32.partialorder %v970, 0.0
  %vm982 = vcmp.gt.f32.partialorder %v973, 0.0
  %v983 = vmul.f32 %v952, 0.01
  %v984 = vmul.f32 %v955, 0.01
  %v985 = vmul.f32 %v958, 0.01
  %v986 = vmul.f32 %v961, 0.01
  %v987 = vmul.f32 %v964, 0.01
  %v988 = vmul.f32 %v967, 0.01
  %v989 = vmul.f32 %v970, 0.01
  %v990 = vmul.f32 %v973, 0.01
  %v991 = vsel %vm975, %v952, %v983
  %v992 = vsel %vm976, %v955, %v984
  %v993 = vsel %vm977, %v958, %v985
  %v994 = vsel %vm978, %v961, %v986
  %v995 = vsel %vm979, %v964, %v987
  %v996 = vsel %vm980, %v967, %v988
  %v997 = vsel %vm981, %v970, %v989
  %v998 = vsel %vm982, %v973, %v990
  %v999 = vld [vmem:[%s5] sm:$0xff]
  %v1000 = vld [vmem:[%s5 + $0x8] sm:$0xff]
  %v1001 = vld [vmem:[%s5 + $0x10] sm:$0xff]
  %v1002 = vld [vmem:[%s5 + $0x18] sm:$0xff]
  %v1003 = vld [vmem:[%s5 + $0x20] sm:$0xff]
  %v1004 = vld [vmem:[%s5 + $0x28] sm:$0xff]
  %v1005 = vld [vmem:[%s5 + $0x30] sm:$0xff]
  %v1006 = vld [vmem:[%s5 + $0x38] sm:$0xff]
  %v1007 = vld [vmem:[%s6] sm:$0xff]
  %v1008 = vld [vmem:[%s6 + $0x8] sm:$0xff]
  %v1009 = vld [vmem:[%s6 + $0x10] sm:$0xff]
  %v1010 = vld [vmem:[%s6 + $0x18] sm:$0xff]
  %v1011 = vld [vmem:[%s6 + $0x20] sm:$0xff]
  %v1012 = vld [vmem:[%s6 + $0x28] sm:$0xff]
  %v1013 = vld [vmem:[%s6 + $0x30] sm:$0xff]
  %v1014 = vld [vmem:[%s6 + $0x38] sm:$0xff]
  %v1015 = vld [vmem:[%s6 + $0x40] sm:$0xff]
  %v1016 = vld [vmem:[%s6 + $0x48] sm:$0xff]
  %v1017 = vld [vmem:[%s6 + $0x50] sm:$0xff]
  %v1018 = vld [vmem:[%s6 + $0x58] sm:$0xff]
  %v1019 = vld [vmem:[%s6 + $0x60] sm:$0xff]
  %v1020 = vld [vmem:[%s6 + $0x68] sm:$0xff]
  %v1021 = vld [vmem:[%s6 + $0x70] sm:$0xff]
  %v1022 = vld [vmem:[%s6 + $0x78] sm:$0xff]
  %v1023 = vld [vmem:[%s6 + $0x80] sm:$0xff]
  %v1024 = vld [vmem:[%s6 + $0x88] sm:$0xff]
  %v1025 = vld [vmem:[%s6 + $0x90] sm:$0xff]
  %v1026 = vld [vmem:[%s6 + $0x98] sm:$0xff]
  %v1027 = vld [vmem:[%s6 + $0xa0] sm:$0xff]
  %v1028 = vld [vmem:[%s6 + $0xa8] sm:$0xff]
  %v1029 = vld [vmem:[%s6 + $0xb0] sm:$0xff]
  %v1030 = vld [vmem:[%s6 + $0xb8] sm:$0xff]
  %v1031 = vld [vmem:[%s6 + $0xc0] sm:$0xff]
  %v1032 = vld [vmem:[%s6 + $0xc8] sm:$0xff]
  %v1033 = vld [vmem:[%s6 + $0xd0] sm:$0xff]
  %v1034 = vld [vmem:[%s6 + $0xd8] sm:$0xff]
  %v1035 = vld [vmem:[%s6 + $0xe0] sm:$0xff]
  %v1036 = vld [vmem:[%s6 + $0xe8] sm:$0xff]
  %v1037 = vld [vmem:[%s6 + $0xf0] sm:$0xff]
  %v1038 = vld [vmem:[%s6 + $0xf8] sm:$0xff]
  %v1039 = vld [vmem:[%s6 + $0x100] sm:$0xff]
  %v1040 = vld [vmem:[%s6 + $0x108] sm:$0xff]
  %v1041 = vld [vmem:[%s6 + $0x110] sm:$0xff]
  %v1042 = vld [vmem:[%s6 + $0x118] sm:$0xff]
  %v1043 = vld [vmem:[%s6 + $0x120] sm:$0xff]
  %v1044 = vld [vmem:[%s6 + $0x128] sm:$0xff]
  %v1045 = vld [vmem:[%s6 + $0x130] sm:$0xff]
  %v1046 = vld [vmem:[%s6 + $0x138] sm:$0xff]
  %v1047 = vld [vmem:[%s6 + $0x140] sm:$0xff]
  %v1048 = vld [vmem:[%s6 + $0x148] sm:$0xff]
  %v1049 = vld [vmem:[%s6 + $0x150] sm:$0xff]
  %v1050 = vld [vmem:[%s6 + $0x158] sm:$0xff]
  %v1051 = vld [vmem:[%s6 + $0x160] sm:$0xff]
  %v1052 = vld [vmem:[%s6 + $0x168] sm:$0xff]
  %v1053 = vld [vmem:[%s6 + $0x170] sm:$0xff]
  %v1054 = vld [vmem:[%s6 + $0x178] sm:$0xff]
  %v1055 = vld [vmem:[%s7] sm:$0x1]
  %v1057 = vperm.slane %v1055, 0
  %1059 = vmatpush.msra.mxu0 %v1052
  %1060 = vmatpush.msra.mxu0 %v1049
  %1061 = vmatpush.msra.mxu0 %v1046
  %1062 = vmatpush.msra.mxu0 %v1043
  %1063 = vmatpush.msra.mxu0 %v1040
  %1064 = vmatpush.msra.mxu0 %v1037
  %1065 = vmatpush.msra.mxu0 %v1034
  %1066 = vmatpush.msra.mxu0 %v1031
  %1067 = vmatpush.msra.mxu0 %v1028
  %1068 = vmatpush.msra.mxu0 %v1025
  %1069 = vmatpush.msra.mxu0 %v1022
  %1070 = vmatpush.msra.mxu0 %v1019
  %1071 = vmatpush.msra.mxu0 %v1016
  %1072 = vmatpush.msra.mxu0 %v1013
  %1073 = vmatpush.msra.mxu0 %v1010
  %1074 = vmatpush.msra.mxu0 %v1007
  %1075 = vmatmul.f32.gmra.mxu0 %v991
  %v1076 = vpop.f32.mrf.mxu0
  %v1077 = vadd.f32 0.0, %v1076
  %1078 = vmatmul.f32.gmra.mxu0 %v992
  %v1079 = vpop.f32.mrf.mxu0
  %v1080 = vadd.f32 0.0, %v1079
  %1081 = vmatmul.f32.gmra.mxu0 %v993
  %v1082 = vpop.f32.mrf.mxu0
  %v1083 = vadd.f32 0.0, %v1082
  %1084 = vmatmul.f32.gmra.mxu0 %v994
  %v1085 = vpop.f32.mrf.mxu0
  %v1086 = vadd.f32 0.0, %v1085
  %1087 = vmatmul.f32.gmra.mxu0 %v995
  %v1088 = vpop.f32.mrf.mxu0
  %v1089 = vadd.f32 0.0, %v1088
  %1090 = vmatmul.f32.gmra.mxu0 %v996
  %v1091 = vpop.f32.mrf.mxu0
  %v1092 = vadd.f32 0.0, %v1091
  %1093 = vmatmul.f32.gmra.mxu0 %v997
  %v1094 = vpop.f32.mrf.mxu0
  %v1095 = vadd.f32 0.0, %v1094
  %1096 = vmatmul.f32.gmra.mxu0 %v998
  %v1097 = vpop.f32.mrf.mxu0
  %v1098 = vadd.f32 0.0, %v1097
  %1099 = vdwg.mxu0
  %1100 = vmatpush.msra.mxu0 %v1053
  %1101 = vmatpush.msra.mxu0 %v1050
  %1102 = vmatpush.msra.mxu0 %v1047
  %1103 = vmatpush.msra.mxu0 %v1044
  %1104 = vmatpush.msra.mxu0 %v1041
  %1105 = vmatpush.msra.mxu0 %v1038
  %1106 = vmatpush.msra.mxu0 %v1035
  %1107 = vmatpush.msra.mxu0 %v1032
  %1108 = vmatpush.msra.mxu0 %v1029
  %1109 = vmatpush.msra.mxu0 %v1026
  %1110 = vmatpush.msra.mxu0 %v1023
  %1111 = vmatpush.msra.mxu0 %v1020
  %1112 = vmatpush.msra.mxu0 %v1017
  %1113 = vmatpush.msra.mxu0 %v1014
  %1114 = vmatpush.msra.mxu0 %v1011
  %1115 = vmatpush.msra.mxu0 %v1008
  %1116 = vmatmul.f32.gmra.mxu0 %v991
  %v1117 = vpop.f32.mrf.mxu0
  %v1118 = vadd.f32 0.0, %v1117
  %1119 = vmatmul.f32.gmra.mxu0 %v992
  %v1120 = vpop.f32.mrf.mxu0
  %v1121 = vadd.f32 0.0, %v1120
  %1122 = vmatmul.f32.gmra.mxu0 %v993
  %v1123 = vpop.f32.mrf.mxu0
  %v1124 = vadd.f32 0.0, %v1123
  %1125 = vmatmul.f32.gmra.mxu0 %v994
  %v1126 = vpop.f32.mrf.mxu0
  %v1127 = vadd.f32 0.0, %v1126
  %1128 = vmatmul.f32.gmra.mxu0 %v995
  %v1129 = vpop.f32.mrf.mxu0
  %v1130 = vadd.f32 0.0, %v1129
  %1131 = vmatmul.f32.gmra.mxu0 %v996
  %v1132 = vpop.f32.mrf.mxu0
  %v1133 = vadd.f32 0.0, %v1132
  %1134 = vmatmul.f32.gmra.mxu0 %v997
  %v1135 = vpop.f32.mrf.mxu0
  %v1136 = vadd.f32 0.0, %v1135
  %1137 = vmatmul.f32.gmra.mxu0 %v998
  %v1138 = vpop.f32.mrf.mxu0
  %v1139 = vadd.f32 0.0, %v1138
  %1140 = vdwg.mxu0
  %1141 = vmatpush.msra.mxu0 %v1054
  %1142 = vmatpush.msra.mxu0 %v1051
  %1143 = vmatpush.msra.mxu0 %v1048
  %1144 = vmatpush.msra.mxu0 %v1045
  %1145 = vmatpush.msra.mxu0 %v1042
  %1146 = vmatpush.msra.mxu0 %v1039
  %1147 = vmatpush.msra.mxu0 %v1036
  %1148 = vmatpush.msra.mxu0 %v1033
  %1149 = vmatpush.msra.mxu0 %v1030
  %1150 = vmatpush.msra.mxu0 %v1027
  %1151 = vmatpush.msra.mxu0 %v1024
  %1152 = vmatpush.msra.mxu0 %v1021
  %1153 = vmatpush.msra.mxu0 %v1018
  %1154 = vmatpush.msra.mxu0 %v1015
  %1155 = vmatpush.msra.mxu0 %v1012
  %1156 = vmatpush.msra.mxu0 %v1009
  %1157 = vmatmul.f32.gmra.mxu0 %v991
  %v1158 = vpop.f32.mrf.mxu0
  %v1159 = vadd.f32 0.0, %v1158
  %1160 = vmatmul.f32.gmra.mxu0 %v992
  %v1161 = vpop.f32.mrf.mxu0
  %v1162 = vadd.f32 0.0, %v1161
  %1163 = vmatmul.f32.gmra.mxu0 %v993
  %v1164 = vpop.f32.mrf.mxu0
  %v1165 = vadd.f32 0.0, %v1164
  %1166 = vmatmul.f32.gmra.mxu0 %v994
  %v1167 = vpop.f32.mrf.mxu0
  %v1168 = vadd.f32 0.0, %v1167
  %1169 = vmatmul.f32.gmra.mxu0 %v995
  %v1170 = vpop.f32.mrf.mxu0
  %v1171 = vadd.f32 0.0, %v1170
  %1172 = vmatmul.f32.gmra.mxu0 %v996
  %v1173 = vpop.f32.mrf.mxu0
  %v1174 = vadd.f32 0.0, %v1173
  %1175 = vmatmul.f32.gmra.mxu0 %v997
  %v1176 = vpop.f32.mrf.mxu0
  %v1177 = vadd.f32 0.0, %v1176
  %1178 = vmatmul.f32.gmra.mxu0 %v998
  %v1179 = vpop.f32.mrf.mxu0
  %v1180 = vadd.f32 0.0, %v1179
  %1181 = vdwg.mxu0
  %1182 = vmatpush.msra.mxu0 %v1180
  %1183 = vmatpush.msra.mxu0 %v1177
  %1184 = vmatpush.msra.mxu0 %v1174
  %1185 = vmatpush.msra.mxu0 %v1171
  %1186 = vmatpush.msra.mxu0 %v1168
  %1187 = vmatpush.msra.mxu0 %v1165
  %1188 = vmatpush.msra.mxu0 %v1162
  %1189 = vmatpush.msra.mxu0 %v1159
  %1190 = vmatpush.msra.mxu0 %v1139
  %1191 = vmatpush.msra.mxu0 %v1136
  %1192 = vmatpush.msra.mxu0 %v1133
  %1193 = vmatpush.msra.mxu0 %v1130
  %1194 = vmatpush.msra.mxu0 %v1127
  %1195 = vmatpush.msra.mxu0 %v1124
  %1196 = vmatpush.msra.mxu0 %v1121
  %1197 = vmatpush.msra.mxu0 %v1118
  %1198 = vmatmul.f32.gmra.mxu0 %v999
  %v1199 = vpop.f32.mrf.mxu0
  %v1200 = vadd.f32 0.0, %v1199
  %1201 = vmatmul.f32.gmra.mxu0 %v1000
  %v1202 = vpop.f32.mrf.mxu0
  %v1203 = vadd.f32 0.0, %v1202
  %1204 = vmatmul.f32.gmra.mxu0 %v1001
  %v1205 = vpop.f32.mrf.mxu0
  %v1206 = vadd.f32 0.0, %v1205
  %1207 = vmatmul.f32.gmra.mxu0 %v1002
  %v1208 = vpop.f32.mrf.mxu0
  %v1209 = vadd.f32 0.0, %v1208
  %1210 = vmatmul.f32.gmra.mxu0 %v1003
  %v1211 = vpop.f32.mrf.mxu0
  %v1212 = vadd.f32 0.0, %v1211
  %1213 = vmatmul.f32.gmra.mxu0 %v1004
  %v1214 = vpop.f32.mrf.mxu0
  %v1215 = vadd.f32 0.0, %v1214
  %1216 = vmatmul.f32.gmra.mxu0 %v1005
  %v1217 = vpop.f32.mrf.mxu0
  %v1218 = vadd.f32 0.0, %v1217
  %1219 = vmatmul.f32.gmra.mxu0 %v1006
  %v1220 = vpop.f32.mrf.mxu0
  %v1221 = vadd.f32 0.0, %v1220
  %1222 = vdwg.mxu0
  %v1223 = vadd.f32 %v1077, %v1200
  %v1224 = vadd.f32 %v1080, %v1203
  %v1225 = vadd.f32 %v1083, %v1206
  %v1226 = vadd.f32 %v1086, %v1209
  %v1227 = vadd.f32 %v1089, %v1212
  %v1228 = vadd.f32 %v1092, %v1215
  %v1229 = vadd.f32 %v1095, %v1218
  %v1230 = vadd.f32 %v1098, %v1221
  %v1231 = vadd.f32 %v1223, %v1057
  %v1232 = vadd.f32 %v1224, %v1057
  %v1233 = vadd.f32 %v1225, %v1057
  %v1234 = vadd.f32 %v1226, %v1057
  %v1235 = vadd.f32 %v1227, %v1057
  %v1236 = vadd.f32 %v1228, %v1057
  %v1237 = vadd.f32 %v1229, %v1057
  %v1238 = vadd.f32 %v1230, %v1057
  %1239 = vmatpush.msra.mxu0 %v1052
  %1240 = vmatpush.msra.mxu0 %v1049
  %1241 = vmatpush.msra.mxu0 %v1046
  %1242 = vmatpush.msra.mxu0 %v1043
  %1243 = vmatpush.msra.mxu0 %v1040
  %1244 = vmatpush.msra.mxu0 %v1037
  %1245 = vmatpush.msra.mxu0 %v1034
  %1246 = vmatpush.msra.mxu0 %v1031
  %1247 = vmatpush.msra.mxu0 %v1028
  %1248 = vmatpush.msra.mxu0 %v1025
  %1249 = vmatpush.msra.mxu0 %v1022
  %1250 = vmatpush.msra.mxu0 %v1019
  %1251 = vmatpush.msra.mxu0 %v1016
  %1252 = vmatpush.msra.mxu0 %v1013
  %1253 = vmatpush.msra.mxu0 %v1010
  %1254 = vmatpush.msra.mxu0 %v1007
  %1255 = vmatmul.f32.gmra.mxu0 %v1231
  %v1256 = vpop.f32.mrf.mxu0
  %v1257 = vadd.f32 0.0, %v1256
  %1258 = vmatmul.f32.gmra.mxu0 %v1232
  %v1259 = vpop.f32.mrf.mxu0
  %v1260 = vadd.f32 0.0, %v1259
  %1261 = vmatmul.f32.gmra.mxu0 %v1233
  %v1262 = vpop.f32.mrf.mxu0
  %v1263 = vadd.f32 0.0, %v1262
  %1264 = vmatmul.f32.gmra.mxu0 %v1234
  %v1265 = vpop.f32.mrf.mxu0
  %v1266 = vadd.f32 0.0, %v1265
  %1267 = vmatmul.f32.gmra.mxu0 %v1235
  %v1268 = vpop.f32.mrf.mxu0
  %v1269 = vadd.f32 0.0, %v1268
  %1270 = vmatmul.f32.gmra.mxu0 %v1236
  %v1271 = vpop.f32.mrf.mxu0
  %v1272 = vadd.f32 0.0, %v1271
  %1273 = vmatmul.f32.gmra.mxu0 %v1237
  %v1274 = vpop.f32.mrf.mxu0
  %v1275 = vadd.f32 0.0, %v1274
  %1276 = vmatmul.f32.gmra.mxu0 %v1238
  %v1277 = vpop.f32.mrf.mxu0
  %v1278 = vadd.f32 0.0, %v1277
  %1279 = vdwg.mxu0
  %1280 = vmatpush.msra.mxu0 %v1053
  %1281 = vmatpush.msra.mxu0 %v1050
  %1282 = vmatpush.msra.mxu0 %v1047
  %1283 = vmatpush.msra.mxu0 %v1044
  %1284 = vmatpush.msra.mxu0 %v1041
  %1285 = vmatpush.msra.mxu0 %v1038
  %1286 = vmatpush.msra.mxu0 %v1035
  %1287 = vmatpush.msra.mxu0 %v1032
  %1288 = vmatpush.msra.mxu0 %v1029
  %1289 = vmatpush.msra.mxu0 %v1026
  %1290 = vmatpush.msra.mxu0 %v1023
  %1291 = vmatpush.msra.mxu0 %v1020
  %1292 = vmatpush.msra.mxu0 %v1017
  %1293 = vmatpush.msra.mxu0 %v1014
  %1294 = vmatpush.msra.mxu0 %v1011
  %1295 = vmatpush.msra.mxu0 %v1008
  %1296 = vmatmul.f32.gmra.mxu0 %v1231
  %v1297 = vpop.f32.mrf.mxu0
  %v1298 = vadd.f32 0.0, %v1297
  %1299 = vmatmul.f32.gmra.mxu0 %v1232
  %v1300 = vpop.f32.mrf.mxu0
  %v1301 = vadd.f32 0.0, %v1300
  %1302 = vmatmul.f32.gmra.mxu0 %v1233
  %v1303 = vpop.f32.mrf.mxu0
  %v1304 = vadd.f32 0.0, %v1303
  %1305 = vmatmul.f32.gmra.mxu0 %v1234
  %v1306 = vpop.f32.mrf.mxu0
  %v1307 = vadd.f32 0.0, %v1306
  %1308 = vmatmul.f32.gmra.mxu0 %v1235
  %v1309 = vpop.f32.mrf.mxu0
  %v1310 = vadd.f32 0.0, %v1309
  %1311 = vmatmul.f32.gmra.mxu0 %v1236
  %v1312 = vpop.f32.mrf.mxu0
  %v1313 = vadd.f32 0.0, %v1312
  %1314 = vmatmul.f32.gmra.mxu0 %v1237
  %v1315 = vpop.f32.mrf.mxu0
  %v1316 = vadd.f32 0.0, %v1315
  %1317 = vmatmul.f32.gmra.mxu0 %v1238
  %v1318 = vpop.f32.mrf.mxu0
  %v1319 = vadd.f32 0.0, %v1318
  %1320 = vdwg.mxu0
  %1321 = vmatpush.msra.mxu0 %v1054
  %1322 = vmatpush.msra.mxu0 %v1051
  %1323 = vmatpush.msra.mxu0 %v1048
  %1324 = vmatpush.msra.mxu0 %v1045
  %1325 = vmatpush.msra.mxu0 %v1042
  %1326 = vmatpush.msra.mxu0 %v1039
  %1327 = vmatpush.msra.mxu0 %v1036
  %1328 = vmatpush.msra.mxu0 %v1033
  %1329 = vmatpush.msra.mxu0 %v1030
  %1330 = vmatpush.msra.mxu0 %v1027
  %1331 = vmatpush.msra.mxu0 %v1024
  %1332 = vmatpush.msra.mxu0 %v1021
  %1333 = vmatpush.msra.mxu0 %v1018
  %1334 = vmatpush.msra.mxu0 %v1015
  %1335 = vmatpush.msra.mxu0 %v1012
  %1336 = vmatpush.msra.mxu0 %v1009
  %1337 = vmatmul.f32.gmra.mxu0 %v1231
  %v1338 = vpop.f32.mrf.mxu0
  %v1339 = vadd.f32 0.0, %v1338
  %1340 = vmatmul.f32.gmra.mxu0 %v1232
  %v1341 = vpop.f32.mrf.mxu0
  %v1342 = vadd.f32 0.0, %v1341
  %1343 = vmatmul.f32.gmra.mxu0 %v1233
  %v1344 = vpop.f32.mrf.mxu0
  %v1345 = vadd.f32 0.0, %v1344
  %1346 = vmatmul.f32.gmra.mxu0 %v1234
  %v1347 = vpop.f32.mrf.mxu0
  %v1348 = vadd.f32 0.0, %v1347
  %1349 = vmatmul.f32.gmra.mxu0 %v1235
  %v1350 = vpop.f32.mrf.mxu0
  %v1351 = vadd.f32 0.0, %v1350
  %1352 = vmatmul.f32.gmra.mxu0 %v1236
  %v1353 = vpop.f32.mrf.mxu0
  %v1354 = vadd.f32 0.0, %v1353
  %1355 = vmatmul.f32.gmra.mxu0 %v1237
  %v1356 = vpop.f32.mrf.mxu0
  %v1357 = vadd.f32 0.0, %v1356
  %1358 = vmatmul.f32.gmra.mxu0 %v1238
  %v1359 = vpop.f32.mrf.mxu0
  %v1360 = vadd.f32 0.0, %v1359
  %1361 = vdwg.mxu0
  %1362 = vmatpush.msra.mxu0 %v1360
  %1363 = vmatpush.msra.mxu0 %v1357
  %1364 = vmatpush.msra.mxu0 %v1354
  %1365 = vmatpush.msra.mxu0 %v1351
  %1366 = vmatpush.msra.mxu0 %v1348
  %1367 = vmatpush.msra.mxu0 %v1345
  %1368 = vmatpush.msra.mxu0 %v1342
  %1369 = vmatpush.msra.mxu0 %v1339
  %1370 = vmatpush.msra.mxu0 %v1319
  %1371 = vmatpush.msra.mxu0 %v1316
  %1372 = vmatpush.msra.mxu0 %v1313
  %1373 = vmatpush.msra.mxu0 %v1310
  %1374 = vmatpush.msra.mxu0 %v1307
  %1375 = vmatpush.msra.mxu0 %v1304
  %1376 = vmatpush.msra.mxu0 %v1301
  %1377 = vmatpush.msra.mxu0 %v1298
  %1378 = vmatmul.f32.gmra.mxu0 %v999
  %v1379 = vpop.f32.mrf.mxu0
  %v1380 = vadd.f32 0.0, %v1379
  %1381 = vmatmul.f32.gmra.mxu0 %v1000
  %v1382 = vpop.f32.mrf.mxu0
  %v1383 = vadd.f32 0.0, %v1382
  %1384 = vmatmul.f32.gmra.mxu0 %v1001
  %v1385 = vpop.f32.mrf.mxu0
  %v1386 = vadd.f32 0.0, %v1385
  %1387 = vmatmul.f32.gmra.mxu0 %v1002
  %v1388 = vpop.f32.mrf.mxu0
  %v1389 = vadd.f32 0.0, %v1388
  %1390 = vmatmul.f32.gmra.mxu0 %v1003
  %v1391 = vpop.f32.mrf.mxu0
  %v1392 = vadd.f32 0.0, %v1391
  %1393 = vmatmul.f32.gmra.mxu0 %v1004
  %v1394 = vpop.f32.mrf.mxu0
  %v1395 = vadd.f32 0.0, %v1394
  %1396 = vmatmul.f32.gmra.mxu0 %v1005
  %v1397 = vpop.f32.mrf.mxu0
  %v1398 = vadd.f32 0.0, %v1397
  %1399 = vmatmul.f32.gmra.mxu0 %v1006
  %v1400 = vpop.f32.mrf.mxu0
  %v1401 = vadd.f32 0.0, %v1400
  %1402 = vdwg.mxu0
  %v1403 = vadd.f32 %v1257, %v1380
  %v1404 = vadd.f32 %v1260, %v1383
  %v1405 = vadd.f32 %v1263, %v1386
  %v1406 = vadd.f32 %v1266, %v1389
  %v1407 = vadd.f32 %v1269, %v1392
  %v1408 = vadd.f32 %v1272, %v1395
  %v1409 = vadd.f32 %v1275, %v1398
  %v1410 = vadd.f32 %v1278, %v1401
  %v1411 = vadd.f32 %v1403, %v1057
  %v1412 = vadd.f32 %v1404, %v1057
  %v1413 = vadd.f32 %v1405, %v1057
  %v1414 = vadd.f32 %v1406, %v1057
  %v1415 = vadd.f32 %v1407, %v1057
  %v1416 = vadd.f32 %v1408, %v1057
  %v1417 = vadd.f32 %v1409, %v1057
  %v1418 = vadd.f32 %v1410, %v1057
  %1419 = vmatpush.msra.mxu0 %v1052
  %1420 = vmatpush.msra.mxu0 %v1049
  %1421 = vmatpush.msra.mxu0 %v1046
  %1422 = vmatpush.msra.mxu0 %v1043
  %1423 = vmatpush.msra.mxu0 %v1040
  %1424 = vmatpush.msra.mxu0 %v1037
  %1425 = vmatpush.msra.mxu0 %v1034
  %1426 = vmatpush.msra.mxu0 %v1031
  %1427 = vmatpush.msra.mxu0 %v1028
  %1428 = vmatpush.msra.mxu0 %v1025
  %1429 = vmatpush.msra.mxu0 %v1022
  %1430 = vmatpush.msra.mxu0 %v1019
  %1431 = vmatpush.msra.mxu0 %v1016
  %1432 = vmatpush.msra.mxu0 %v1013
  %1433 = vmatpush.msra.mxu0 %v1010
  %1434 = vmatpush.msra.mxu0 %v1007
  %1435 = vmatmul.f32.gmra.mxu0 %v1411
  %v1436 = vpop.f32.mrf.mxu0
  %v1437 = vadd.f32 0.0, %v1436
  %1438 = vmatmul.f32.gmra.mxu0 %v1412
  %v1439 = vpop.f32.mrf.mxu0
  %v1440 = vadd.f32 0.0, %v1439
  %1441 = vmatmul.f32.gmra.mxu0 %v1413
  %v1442 = vpop.f32.mrf.mxu0
  %v1443 = vadd.f32 0.0, %v1442
  %1444 = vmatmul.f32.gmra.mxu0 %v1414
  %v1445 = vpop.f32.mrf.mxu0
  %v1446 = vadd.f32 0.0, %v1445
  %1447 = vmatmul.f32.gmra.mxu0 %v1415
  %v1448 = vpop.f32.mrf.mxu0
  %v1449 = vadd.f32 0.0, %v1448
  %1450 = vmatmul.f32.gmra.mxu0 %v1416
  %v1451 = vpop.f32.mrf.mxu0
  %v1452 = vadd.f32 0.0, %v1451
  %1453 = vmatmul.f32.gmra.mxu0 %v1417
  %v1454 = vpop.f32.mrf.mxu0
  %v1455 = vadd.f32 0.0, %v1454
  %1456 = vmatmul.f32.gmra.mxu0 %v1418
  %v1457 = vpop.f32.mrf.mxu0
  %v1458 = vadd.f32 0.0, %v1457
  %1459 = vdwg.mxu0
  %1460 = vmatpush.msra.mxu0 %v1053
  %1461 = vmatpush.msra.mxu0 %v1050
  %1462 = vmatpush.msra.mxu0 %v1047
  %1463 = vmatpush.msra.mxu0 %v1044
  %1464 = vmatpush.msra.mxu0 %v1041
  %1465 = vmatpush.msra.mxu0 %v1038
  %1466 = vmatpush.msra.mxu0 %v1035
  %1467 = vmatpush.msra.mxu0 %v1032
  %1468 = vmatpush.msra.mxu0 %v1029
  %1469 = vmatpush.msra.mxu0 %v1026
  %1470 = vmatpush.msra.mxu0 %v1023
  %1471 = vmatpush.msra.mxu0 %v1020
  %1472 = vmatpush.msra.mxu0 %v1017
  %1473 = vmatpush.msra.mxu0 %v1014
  %1474 = vmatpush.msra.mxu0 %v1011
  %1475 = vmatpush.msra.mxu0 %v1008
  %1476 = vmatmul.f32.gmra.mxu0 %v1411
  %v1477 = vpop.f32.mrf.mxu0
  %v1478 = vadd.f32 0.0, %v1477
  %1479 = vmatmul.f32.gmra.mxu0 %v1412
  %v1480 = vpop.f32.mrf.mxu0
  %v1481 = vadd.f32 0.0, %v1480
  %1482 = vmatmul.f32.gmra.mxu0 %v1413
  %v1483 = vpop.f32.mrf.mxu0
  %v1484 = vadd.f32 0.0, %v1483
  %1485 = vmatmul.f32.gmra.mxu0 %v1414
  %v1486 = vpop.f32.mrf.mxu0
  %v1487 = vadd.f32 0.0, %v1486
  %1488 = vmatmul.f32.gmra.mxu0 %v1415
  %v1489 = vpop.f32.mrf.mxu0
  %v1490 = vadd.f32 0.0, %v1489
  %1491 = vmatmul.f32.gmra.mxu0 %v1416
  %v1492 = vpop.f32.mrf.mxu0
  %v1493 = vadd.f32 0.0, %v1492
  %1494 = vmatmul.f32.gmra.mxu0 %v1417
  %v1495 = vpop.f32.mrf.mxu0
  %v1496 = vadd.f32 0.0, %v1495
  %1497 = vmatmul.f32.gmra.mxu0 %v1418
  %v1498 = vpop.f32.mrf.mxu0
  %v1499 = vadd.f32 0.0, %v1498
  %1500 = vdwg.mxu0
  %1501 = vmatpush.msra.mxu0 %v1054
  %1502 = vmatpush.msra.mxu0 %v1051
  %1503 = vmatpush.msra.mxu0 %v1048
  %1504 = vmatpush.msra.mxu0 %v1045
  %1505 = vmatpush.msra.mxu0 %v1042
  %1506 = vmatpush.msra.mxu0 %v1039
  %1507 = vmatpush.msra.mxu0 %v1036
  %1508 = vmatpush.msra.mxu0 %v1033
  %1509 = vmatpush.msra.mxu0 %v1030
  %1510 = vmatpush.msra.mxu0 %v1027
  %1511 = vmatpush.msra.mxu0 %v1024
  %1512 = vmatpush.msra.mxu0 %v1021
  %1513 = vmatpush.msra.mxu0 %v1018
  %1514 = vmatpush.msra.mxu0 %v1015
  %1515 = vmatpush.msra.mxu0 %v1012
  %1516 = vmatpush.msra.mxu0 %v1009
  %1517 = vmatmul.f32.gmra.mxu0 %v1411
  %v1518 = vpop.f32.mrf.mxu0
  %v1519 = vadd.f32 0.0, %v1518
  %1520 = vmatmul.f32.gmra.mxu0 %v1412
  %v1521 = vpop.f32.mrf.mxu0
  %v1522 = vadd.f32 0.0, %v1521
  %1523 = vmatmul.f32.gmra.mxu0 %v1413
  %v1524 = vpop.f32.mrf.mxu0
  %v1525 = vadd.f32 0.0, %v1524
  %1526 = vmatmul.f32.gmra.mxu0 %v1414
  %v1527 = vpop.f32.mrf.mxu0
  %v1528 = vadd.f32 0.0, %v1527
  %1529 = vmatmul.f32.gmra.mxu0 %v1415
  %v1530 = vpop.f32.mrf.mxu0
  %v1531 = vadd.f32 0.0, %v1530
  %1532 = vmatmul.f32.gmra.mxu0 %v1416
  %v1533 = vpop.f32.mrf.mxu0
  %v1534 = vadd.f32 0.0, %v1533
  %1535 = vmatmul.f32.gmra.mxu0 %v1417
  %v1536 = vpop.f32.mrf.mxu0
  %v1537 = vadd.f32 0.0, %v1536
  %1538 = vmatmul.f32.gmra.mxu0 %v1418
  %v1539 = vpop.f32.mrf.mxu0
  %v1540 = vadd.f32 0.0, %v1539
  %1541 = vdwg.mxu0
  %1542 = vmatpush.msra.mxu0 %v1540
  %1543 = vmatpush.msra.mxu0 %v1537
  %1544 = vmatpush.msra.mxu0 %v1534
  %1545 = vmatpush.msra.mxu0 %v1531
  %1546 = vmatpush.msra.mxu0 %v1528
  %1547 = vmatpush.msra.mxu0 %v1525
  %1548 = vmatpush.msra.mxu0 %v1522
  %1549 = vmatpush.msra.mxu0 %v1519
  %1550 = vmatpush.msra.mxu0 %v1499
  %1551 = vmatpush.msra.mxu0 %v1496
  %1552 = vmatpush.msra.mxu0 %v1493
  %1553 = vmatpush.msra.mxu0 %v1490
  %1554 = vmatpush.msra.mxu0 %v1487
  %1555 = vmatpush.msra.mxu0 %v1484
  %1556 = vmatpush.msra.mxu0 %v1481
  %1557 = vmatpush.msra.mxu0 %v1478
  %1558 = vmatmul.f32.gmra.mxu0 %v999
  %v1559 = vpop.f32.mrf.mxu0
  %v1560 = vadd.f32 0.0, %v1559
  %1561 = vmatmul.f32.gmra.mxu0 %v1000
  %v1562 = vpop.f32.mrf.mxu0
  %v1563 = vadd.f32 0.0, %v1562
  %1564 = vmatmul.f32.gmra.mxu0 %v1001
  %v1565 = vpop.f32.mrf.mxu0
  %v1566 = vadd.f32 0.0, %v1565
  %1567 = vmatmul.f32.gmra.mxu0 %v1002
  %v1568 = vpop.f32.mrf.mxu0
  %v1569 = vadd.f32 0.0, %v1568
  %1570 = vmatmul.f32.gmra.mxu0 %v1003
  %v1571 = vpop.f32.mrf.mxu0
  %v1572 = vadd.f32 0.0, %v1571
  %1573 = vmatmul.f32.gmra.mxu0 %v1004
  %v1574 = vpop.f32.mrf.mxu0
  %v1575 = vadd.f32 0.0, %v1574
  %1576 = vmatmul.f32.gmra.mxu0 %v1005
  %v1577 = vpop.f32.mrf.mxu0
  %v1578 = vadd.f32 0.0, %v1577
  %1579 = vmatmul.f32.gmra.mxu0 %v1006
  %v1580 = vpop.f32.mrf.mxu0
  %v1581 = vadd.f32 0.0, %v1580
  %1582 = vdwg.mxu0
  %v1583 = vadd.f32 %v1437, %v1560
  %v1584 = vadd.f32 %v1440, %v1563
  %v1585 = vadd.f32 %v1443, %v1566
  %v1586 = vadd.f32 %v1446, %v1569
  %v1587 = vadd.f32 %v1449, %v1572
  %v1588 = vadd.f32 %v1452, %v1575
  %v1589 = vadd.f32 %v1455, %v1578
  %v1590 = vadd.f32 %v1458, %v1581
  %v1591 = vadd.f32 %v1583, %v1057
  %v1592 = vadd.f32 %v1584, %v1057
  %v1593 = vadd.f32 %v1585, %v1057
  %v1594 = vadd.f32 %v1586, %v1057
  %v1595 = vadd.f32 %v1587, %v1057
  %v1596 = vadd.f32 %v1588, %v1057
  %v1597 = vadd.f32 %v1589, %v1057
  %v1598 = vadd.f32 %v1590, %v1057
  %1599 = vmatpush.msra.mxu0 %v1052
  %1600 = vmatpush.msra.mxu0 %v1049
  %1601 = vmatpush.msra.mxu0 %v1046
  %1602 = vmatpush.msra.mxu0 %v1043
  %1603 = vmatpush.msra.mxu0 %v1040
  %1604 = vmatpush.msra.mxu0 %v1037
  %1605 = vmatpush.msra.mxu0 %v1034
  %1606 = vmatpush.msra.mxu0 %v1031
  %1607 = vmatpush.msra.mxu0 %v1028
  %1608 = vmatpush.msra.mxu0 %v1025
  %1609 = vmatpush.msra.mxu0 %v1022
  %1610 = vmatpush.msra.mxu0 %v1019
  %1611 = vmatpush.msra.mxu0 %v1016
  %1612 = vmatpush.msra.mxu0 %v1013
  %1613 = vmatpush.msra.mxu0 %v1010
  %1614 = vmatpush.msra.mxu0 %v1007
  %1615 = vmatmul.f32.gmra.mxu0 %v1591
  %v1616 = vpop.f32.mrf.mxu0
  %v1617 = vadd.f32 0.0, %v1616
  %1618 = vmatmul.f32.gmra.mxu0 %v1592
  %v1619 = vpop.f32.mrf.mxu0
  %v1620 = vadd.f32 0.0, %v1619
  %1621 = vmatmul.f32.gmra.mxu0 %v1593
  %v1622 = vpop.f32.mrf.mxu0
  %v1623 = vadd.f32 0.0, %v1622
  %1624 = vmatmul.f32.gmra.mxu0 %v1594
  %v1625 = vpop.f32.mrf.mxu0
  %v1626 = vadd.f32 0.0, %v1625
  %1627 = vmatmul.f32.gmra.mxu0 %v1595
  %v1628 = vpop.f32.mrf.mxu0
  %v1629 = vadd.f32 0.0, %v1628
  %1630 = vmatmul.f32.gmra.mxu0 %v1596
  %v1631 = vpop.f32.mrf.mxu0
  %v1632 = vadd.f32 0.0, %v1631
  %1633 = vmatmul.f32.gmra.mxu0 %v1597
  %v1634 = vpop.f32.mrf.mxu0
  %v1635 = vadd.f32 0.0, %v1634
  %1636 = vmatmul.f32.gmra.mxu0 %v1598
  %v1637 = vpop.f32.mrf.mxu0
  %v1638 = vadd.f32 0.0, %v1637
  %1639 = vdwg.mxu0
  %1640 = vmatpush.msra.mxu0 %v1053
  %1641 = vmatpush.msra.mxu0 %v1050
  %1642 = vmatpush.msra.mxu0 %v1047
  %1643 = vmatpush.msra.mxu0 %v1044
  %1644 = vmatpush.msra.mxu0 %v1041
  %1645 = vmatpush.msra.mxu0 %v1038
  %1646 = vmatpush.msra.mxu0 %v1035
  %1647 = vmatpush.msra.mxu0 %v1032
  %1648 = vmatpush.msra.mxu0 %v1029
  %1649 = vmatpush.msra.mxu0 %v1026
  %1650 = vmatpush.msra.mxu0 %v1023
  %1651 = vmatpush.msra.mxu0 %v1020
  %1652 = vmatpush.msra.mxu0 %v1017
  %1653 = vmatpush.msra.mxu0 %v1014
  %1654 = vmatpush.msra.mxu0 %v1011
  %1655 = vmatpush.msra.mxu0 %v1008
  %1656 = vmatmul.f32.gmra.mxu0 %v1591
  %v1657 = vpop.f32.mrf.mxu0
  %v1658 = vadd.f32 0.0, %v1657
  %1659 = vmatmul.f32.gmra.mxu0 %v1592
  %v1660 = vpop.f32.mrf.mxu0
  %v1661 = vadd.f32 0.0, %v1660
  %1662 = vmatmul.f32.gmra.mxu0 %v1593
  %v1663 = vpop.f32.mrf.mxu0
  %v1664 = vadd.f32 0.0, %v1663
  %1665 = vmatmul.f32.gmra.mxu0 %v1594
  %v1666 = vpop.f32.mrf.mxu0
  %v1667 = vadd.f32 0.0, %v1666
  %1668 = vmatmul.f32.gmra.mxu0 %v1595
  %v1669 = vpop.f32.mrf.mxu0
  %v1670 = vadd.f32 0.0, %v1669
  %1671 = vmatmul.f32.gmra.mxu0 %v1596
  %v1672 = vpop.f32.mrf.mxu0
  %v1673 = vadd.f32 0.0, %v1672
  %1674 = vmatmul.f32.gmra.mxu0 %v1597
  %v1675 = vpop.f32.mrf.mxu0
  %v1676 = vadd.f32 0.0, %v1675
  %1677 = vmatmul.f32.gmra.mxu0 %v1598
  %v1678 = vpop.f32.mrf.mxu0
  %v1679 = vadd.f32 0.0, %v1678
  %1680 = vdwg.mxu0
  %1681 = vmatpush.msra.mxu0 %v1054
  %1682 = vmatpush.msra.mxu0 %v1051
  %1683 = vmatpush.msra.mxu0 %v1048
  %1684 = vmatpush.msra.mxu0 %v1045
  %1685 = vmatpush.msra.mxu0 %v1042
  %1686 = vmatpush.msra.mxu0 %v1039
  %1687 = vmatpush.msra.mxu0 %v1036
  %1688 = vmatpush.msra.mxu0 %v1033
  %1689 = vmatpush.msra.mxu0 %v1030
  %1690 = vmatpush.msra.mxu0 %v1027
  %1691 = vmatpush.msra.mxu0 %v1024
  %1692 = vmatpush.msra.mxu0 %v1021
  %1693 = vmatpush.msra.mxu0 %v1018
  %1694 = vmatpush.msra.mxu0 %v1015
  %1695 = vmatpush.msra.mxu0 %v1012
  %1696 = vmatpush.msra.mxu0 %v1009
  %1697 = vmatmul.f32.gmra.mxu0 %v1591
  %v1698 = vpop.f32.mrf.mxu0
  %v1699 = vadd.f32 0.0, %v1698
  %1700 = vmatmul.f32.gmra.mxu0 %v1592
  %v1701 = vpop.f32.mrf.mxu0
  %v1702 = vadd.f32 0.0, %v1701
  %1703 = vmatmul.f32.gmra.mxu0 %v1593
  %v1704 = vpop.f32.mrf.mxu0
  %v1705 = vadd.f32 0.0, %v1704
  %1706 = vmatmul.f32.gmra.mxu0 %v1594
  %v1707 = vpop.f32.mrf.mxu0
  %v1708 = vadd.f32 0.0, %v1707
  %1709 = vmatmul.f32.gmra.mxu0 %v1595
  %v1710 = vpop.f32.mrf.mxu0
  %v1711 = vadd.f32 0.0, %v1710
  %1712 = vmatmul.f32.gmra.mxu0 %v1596
  %v1713 = vpop.f32.mrf.mxu0
  %v1714 = vadd.f32 0.0, %v1713
  %1715 = vmatmul.f32.gmra.mxu0 %v1597
  %v1716 = vpop.f32.mrf.mxu0
  %v1717 = vadd.f32 0.0, %v1716
  %1718 = vmatmul.f32.gmra.mxu0 %v1598
  %v1719 = vpop.f32.mrf.mxu0
  %v1720 = vadd.f32 0.0, %v1719
  %1721 = vdwg.mxu0
  %1722 = vmatpush.msra.mxu0 %v1720
  %1723 = vmatpush.msra.mxu0 %v1717
  %1724 = vmatpush.msra.mxu0 %v1714
  %1725 = vmatpush.msra.mxu0 %v1711
  %1726 = vmatpush.msra.mxu0 %v1708
  %1727 = vmatpush.msra.mxu0 %v1705
  %1728 = vmatpush.msra.mxu0 %v1702
  %1729 = vmatpush.msra.mxu0 %v1699
  %1730 = vmatpush.msra.mxu0 %v1679
  %1731 = vmatpush.msra.mxu0 %v1676
  %1732 = vmatpush.msra.mxu0 %v1673
  %1733 = vmatpush.msra.mxu0 %v1670
  %1734 = vmatpush.msra.mxu0 %v1667
  %1735 = vmatpush.msra.mxu0 %v1664
  %1736 = vmatpush.msra.mxu0 %v1661
  %1737 = vmatpush.msra.mxu0 %v1658
  %1738 = vmatmul.f32.gmra.mxu0 %v999
  %v1739 = vpop.f32.mrf.mxu0
  %v1740 = vadd.f32 0.0, %v1739
  %1741 = vmatmul.f32.gmra.mxu0 %v1000
  %v1742 = vpop.f32.mrf.mxu0
  %v1743 = vadd.f32 0.0, %v1742
  %1744 = vmatmul.f32.gmra.mxu0 %v1001
  %v1745 = vpop.f32.mrf.mxu0
  %v1746 = vadd.f32 0.0, %v1745
  %1747 = vmatmul.f32.gmra.mxu0 %v1002
  %v1748 = vpop.f32.mrf.mxu0
  %v1749 = vadd.f32 0.0, %v1748
  %1750 = vmatmul.f32.gmra.mxu0 %v1003
  %v1751 = vpop.f32.mrf.mxu0
  %v1752 = vadd.f32 0.0, %v1751
  %1753 = vmatmul.f32.gmra.mxu0 %v1004
  %v1754 = vpop.f32.mrf.mxu0
  %v1755 = vadd.f32 0.0, %v1754
  %1756 = vmatmul.f32.gmra.mxu0 %v1005
  %v1757 = vpop.f32.mrf.mxu0
  %v1758 = vadd.f32 0.0, %v1757
  %1759 = vmatmul.f32.gmra.mxu0 %v1006
  %v1760 = vpop.f32.mrf.mxu0
  %v1761 = vadd.f32 0.0, %v1760
  %1762 = vdwg.mxu0
  %v1763 = vadd.f32 %v1617, %v1740
  %v1764 = vadd.f32 %v1620, %v1743
  %v1765 = vadd.f32 %v1623, %v1746
  %v1766 = vadd.f32 %v1626, %v1749
  %v1767 = vadd.f32 %v1629, %v1752
  %v1768 = vadd.f32 %v1632, %v1755
  %v1769 = vadd.f32 %v1635, %v1758
  %v1770 = vadd.f32 %v1638, %v1761
  %v1771 = vadd.f32 %v1763, %v1057
  %v1772 = vadd.f32 %v1764, %v1057
  %v1773 = vadd.f32 %v1765, %v1057
  %v1774 = vadd.f32 %v1766, %v1057
  %v1775 = vadd.f32 %v1767, %v1057
  %v1776 = vadd.f32 %v1768, %v1057
  %v1777 = vadd.f32 %v1769, %v1057
  %v1778 = vadd.f32 %v1770, %v1057
  %1779 = vmatpush.msra.mxu0 %v1052
  %1780 = vmatpush.msra.mxu0 %v1049
  %1781 = vmatpush.msra.mxu0 %v1046
  %1782 = vmatpush.msra.mxu0 %v1043
  %1783 = vmatpush.msra.mxu0 %v1040
  %1784 = vmatpush.msra.mxu0 %v1037
  %1785 = vmatpush.msra.mxu0 %v1034
  %1786 = vmatpush.msra.mxu0 %v1031
  %1787 = vmatpush.msra.mxu0 %v1028
  %1788 = vmatpush.msra.mxu0 %v1025
  %1789 = vmatpush.msra.mxu0 %v1022
  %1790 = vmatpush.msra.mxu0 %v1019
  %1791 = vmatpush.msra.mxu0 %v1016
  %1792 = vmatpush.msra.mxu0 %v1013
  %1793 = vmatpush.msra.mxu0 %v1010
  %1794 = vmatpush.msra.mxu0 %v1007
  %1795 = vmatmul.f32.gmra.mxu0 %v1771
  %v1796 = vpop.f32.mrf.mxu0
  %v1797 = vadd.f32 0.0, %v1796
  %1798 = vmatmul.f32.gmra.mxu0 %v1772
  %v1799 = vpop.f32.mrf.mxu0
  %v1800 = vadd.f32 0.0, %v1799
  %1801 = vmatmul.f32.gmra.mxu0 %v1773
  %v1802 = vpop.f32.mrf.mxu0
  %v1803 = vadd.f32 0.0, %v1802
  %1804 = vmatmul.f32.gmra.mxu0 %v1774
  %v1805 = vpop.f32.mrf.mxu0
  %v1806 = vadd.f32 0.0, %v1805
  %1807 = vmatmul.f32.gmra.mxu0 %v1775
  %v1808 = vpop.f32.mrf.mxu0
  %v1809 = vadd.f32 0.0, %v1808
  %1810 = vmatmul.f32.gmra.mxu0 %v1776
  %v1811 = vpop.f32.mrf.mxu0
  %v1812 = vadd.f32 0.0, %v1811
  %1813 = vmatmul.f32.gmra.mxu0 %v1777
  %v1814 = vpop.f32.mrf.mxu0
  %v1815 = vadd.f32 0.0, %v1814
  %1816 = vmatmul.f32.gmra.mxu0 %v1778
  %v1817 = vpop.f32.mrf.mxu0
  %v1818 = vadd.f32 0.0, %v1817
  %1819 = vdwg.mxu0
  %1820 = vmatpush.msra.mxu0 %v1053
  %1821 = vmatpush.msra.mxu0 %v1050
  %1822 = vmatpush.msra.mxu0 %v1047
  %1823 = vmatpush.msra.mxu0 %v1044
  %1824 = vmatpush.msra.mxu0 %v1041
  %1825 = vmatpush.msra.mxu0 %v1038
  %1826 = vmatpush.msra.mxu0 %v1035
  %1827 = vmatpush.msra.mxu0 %v1032
  %1828 = vmatpush.msra.mxu0 %v1029
  %1829 = vmatpush.msra.mxu0 %v1026
  %1830 = vmatpush.msra.mxu0 %v1023
  %1831 = vmatpush.msra.mxu0 %v1020
  %1832 = vmatpush.msra.mxu0 %v1017
  %1833 = vmatpush.msra.mxu0 %v1014
  %1834 = vmatpush.msra.mxu0 %v1011
  %1835 = vmatpush.msra.mxu0 %v1008
  %1836 = vmatmul.f32.gmra.mxu0 %v1771
  %v1837 = vpop.f32.mrf.mxu0
  %v1838 = vadd.f32 0.0, %v1837
  %1839 = vmatmul.f32.gmra.mxu0 %v1772
  %v1840 = vpop.f32.mrf.mxu0
  %v1841 = vadd.f32 0.0, %v1840
  %1842 = vmatmul.f32.gmra.mxu0 %v1773
  %v1843 = vpop.f32.mrf.mxu0
  %v1844 = vadd.f32 0.0, %v1843
  %1845 = vmatmul.f32.gmra.mxu0 %v1774
  %v1846 = vpop.f32.mrf.mxu0
  %v1847 = vadd.f32 0.0, %v1846
  %1848 = vmatmul.f32.gmra.mxu0 %v1775
  %v1849 = vpop.f32.mrf.mxu0
  %v1850 = vadd.f32 0.0, %v1849
  %1851 = vmatmul.f32.gmra.mxu0 %v1776
  %v1852 = vpop.f32.mrf.mxu0
  %v1853 = vadd.f32 0.0, %v1852
  %1854 = vmatmul.f32.gmra.mxu0 %v1777
  %v1855 = vpop.f32.mrf.mxu0
  %v1856 = vadd.f32 0.0, %v1855
  %1857 = vmatmul.f32.gmra.mxu0 %v1778
  %v1858 = vpop.f32.mrf.mxu0
  %v1859 = vadd.f32 0.0, %v1858
  %1860 = vdwg.mxu0
  %1861 = vmatpush.msra.mxu0 %v1054
  %1862 = vmatpush.msra.mxu0 %v1051
  %1863 = vmatpush.msra.mxu0 %v1048
  %1864 = vmatpush.msra.mxu0 %v1045
  %1865 = vmatpush.msra.mxu0 %v1042
  %1866 = vmatpush.msra.mxu0 %v1039
  %1867 = vmatpush.msra.mxu0 %v1036
  %1868 = vmatpush.msra.mxu0 %v1033
  %1869 = vmatpush.msra.mxu0 %v1030
  %1870 = vmatpush.msra.mxu0 %v1027
  %1871 = vmatpush.msra.mxu0 %v1024
  %1872 = vmatpush.msra.mxu0 %v1021
  %1873 = vmatpush.msra.mxu0 %v1018
  %1874 = vmatpush.msra.mxu0 %v1015
  %1875 = vmatpush.msra.mxu0 %v1012
  %1876 = vmatpush.msra.mxu0 %v1009
  %1877 = vmatmul.f32.gmra.mxu0 %v1771
  %v1878 = vpop.f32.mrf.mxu0
  %v1879 = vadd.f32 0.0, %v1878
  %1880 = vmatmul.f32.gmra.mxu0 %v1772
  %v1881 = vpop.f32.mrf.mxu0
  %v1882 = vadd.f32 0.0, %v1881
  %1883 = vmatmul.f32.gmra.mxu0 %v1773
  %v1884 = vpop.f32.mrf.mxu0
  %v1885 = vadd.f32 0.0, %v1884
  %1886 = vmatmul.f32.gmra.mxu0 %v1774
  %v1887 = vpop.f32.mrf.mxu0
  %v1888 = vadd.f32 0.0, %v1887
  %1889 = vmatmul.f32.gmra.mxu0 %v1775
  %v1890 = vpop.f32.mrf.mxu0
  %v1891 = vadd.f32 0.0, %v1890
  %1892 = vmatmul.f32.gmra.mxu0 %v1776
  %v1893 = vpop.f32.mrf.mxu0
  %v1894 = vadd.f32 0.0, %v1893
  %1895 = vmatmul.f32.gmra.mxu0 %v1777
  %v1896 = vpop.f32.mrf.mxu0
  %v1897 = vadd.f32 0.0, %v1896
  %1898 = vmatmul.f32.gmra.mxu0 %v1778
  %v1899 = vpop.f32.mrf.mxu0
  %v1900 = vadd.f32 0.0, %v1899
  %1901 = vdwg.mxu0
  %1902 = vmatpush.msra.mxu0 %v1900
  %1903 = vmatpush.msra.mxu0 %v1897
  %1904 = vmatpush.msra.mxu0 %v1894
  %1905 = vmatpush.msra.mxu0 %v1891
  %1906 = vmatpush.msra.mxu0 %v1888
  %1907 = vmatpush.msra.mxu0 %v1885
  %1908 = vmatpush.msra.mxu0 %v1882
  %1909 = vmatpush.msra.mxu0 %v1879
  %1910 = vmatpush.msra.mxu0 %v1859
  %1911 = vmatpush.msra.mxu0 %v1856
  %1912 = vmatpush.msra.mxu0 %v1853
  %1913 = vmatpush.msra.mxu0 %v1850
  %1914 = vmatpush.msra.mxu0 %v1847
  %1915 = vmatpush.msra.mxu0 %v1844
  %1916 = vmatpush.msra.mxu0 %v1841
  %1917 = vmatpush.msra.mxu0 %v1838
  %1918 = vmatmul.f32.gmra.mxu0 %v999
  %v1919 = vpop.f32.mrf.mxu0
  %v1920 = vadd.f32 0.0, %v1919
  %1921 = vmatmul.f32.gmra.mxu0 %v1000
  %v1922 = vpop.f32.mrf.mxu0
  %v1923 = vadd.f32 0.0, %v1922
  %1924 = vmatmul.f32.gmra.mxu0 %v1001
  %v1925 = vpop.f32.mrf.mxu0
  %v1926 = vadd.f32 0.0, %v1925
  %1927 = vmatmul.f32.gmra.mxu0 %v1002
  %v1928 = vpop.f32.mrf.mxu0
  %v1929 = vadd.f32 0.0, %v1928
  %1930 = vmatmul.f32.gmra.mxu0 %v1003
  %v1931 = vpop.f32.mrf.mxu0
  %v1932 = vadd.f32 0.0, %v1931
  %1933 = vmatmul.f32.gmra.mxu0 %v1004
  %v1934 = vpop.f32.mrf.mxu0
  %v1935 = vadd.f32 0.0, %v1934
  %1936 = vmatmul.f32.gmra.mxu0 %v1005
  %v1937 = vpop.f32.mrf.mxu0
  %v1938 = vadd.f32 0.0, %v1937
  %1939 = vmatmul.f32.gmra.mxu0 %v1006
  %v1940 = vpop.f32.mrf.mxu0
  %v1941 = vadd.f32 0.0, %v1940
  %1942 = vdwg.mxu0
  %v1943 = vadd.f32 %v1797, %v1920
  %v1944 = vadd.f32 %v1800, %v1923
  %v1945 = vadd.f32 %v1803, %v1926
  %v1946 = vadd.f32 %v1806, %v1929
  %v1947 = vadd.f32 %v1809, %v1932
  %v1948 = vadd.f32 %v1812, %v1935
  %v1949 = vadd.f32 %v1815, %v1938
  %v1950 = vadd.f32 %v1818, %v1941
  %v1951 = vadd.f32 %v1943, %v1057
  %v1952 = vadd.f32 %v1944, %v1057
  %v1953 = vadd.f32 %v1945, %v1057
  %v1954 = vadd.f32 %v1946, %v1057
  %v1955 = vadd.f32 %v1947, %v1057
  %v1956 = vadd.f32 %v1948, %v1057
  %v1957 = vadd.f32 %v1949, %v1057
  %v1958 = vadd.f32 %v1950, %v1057
  %1959 = vmatpush.msra.mxu0 %v1052
  %1960 = vmatpush.msra.mxu0 %v1049
  %1961 = vmatpush.msra.mxu0 %v1046
  %1962 = vmatpush.msra.mxu0 %v1043
  %1963 = vmatpush.msra.mxu0 %v1040
  %1964 = vmatpush.msra.mxu0 %v1037
  %1965 = vmatpush.msra.mxu0 %v1034
  %1966 = vmatpush.msra.mxu0 %v1031
  %1967 = vmatpush.msra.mxu0 %v1028
  %1968 = vmatpush.msra.mxu0 %v1025
  %1969 = vmatpush.msra.mxu0 %v1022
  %1970 = vmatpush.msra.mxu0 %v1019
  %1971 = vmatpush.msra.mxu0 %v1016
  %1972 = vmatpush.msra.mxu0 %v1013
  %1973 = vmatpush.msra.mxu0 %v1010
  %1974 = vmatpush.msra.mxu0 %v1007
  %1975 = vmatmul.f32.gmra.mxu0 %v1951
  %v1976 = vpop.f32.mrf.mxu0
  %v1977 = vadd.f32 0.0, %v1976
  %1978 = vmatmul.f32.gmra.mxu0 %v1952
  %v1979 = vpop.f32.mrf.mxu0
  %v1980 = vadd.f32 0.0, %v1979
  %1981 = vmatmul.f32.gmra.mxu0 %v1953
  %v1982 = vpop.f32.mrf.mxu0
  %v1983 = vadd.f32 0.0, %v1982
  %1984 = vmatmul.f32.gmra.mxu0 %v1954
  %v1985 = vpop.f32.mrf.mxu0
  %v1986 = vadd.f32 0.0, %v1985
  %1987 = vmatmul.f32.gmra.mxu0 %v1955
  %v1988 = vpop.f32.mrf.mxu0
  %v1989 = vadd.f32 0.0, %v1988
  %1990 = vmatmul.f32.gmra.mxu0 %v1956
  %v1991 = vpop.f32.mrf.mxu0
  %v1992 = vadd.f32 0.0, %v1991
  %1993 = vmatmul.f32.gmra.mxu0 %v1957
  %v1994 = vpop.f32.mrf.mxu0
  %v1995 = vadd.f32 0.0, %v1994
  %1996 = vmatmul.f32.gmra.mxu0 %v1958
  %v1997 = vpop.f32.mrf.mxu0
  %v1998 = vadd.f32 0.0, %v1997
  %1999 = vdwg.mxu0
  %2000 = vmatpush.msra.mxu0 %v1053
  %2001 = vmatpush.msra.mxu0 %v1050
  %2002 = vmatpush.msra.mxu0 %v1047
  %2003 = vmatpush.msra.mxu0 %v1044
  %2004 = vmatpush.msra.mxu0 %v1041
  %2005 = vmatpush.msra.mxu0 %v1038
  %2006 = vmatpush.msra.mxu0 %v1035
  %2007 = vmatpush.msra.mxu0 %v1032
  %2008 = vmatpush.msra.mxu0 %v1029
  %2009 = vmatpush.msra.mxu0 %v1026
  %2010 = vmatpush.msra.mxu0 %v1023
  %2011 = vmatpush.msra.mxu0 %v1020
  %2012 = vmatpush.msra.mxu0 %v1017
  %2013 = vmatpush.msra.mxu0 %v1014
  %2014 = vmatpush.msra.mxu0 %v1011
  %2015 = vmatpush.msra.mxu0 %v1008
  %2016 = vmatmul.f32.gmra.mxu0 %v1951
  %v2017 = vpop.f32.mrf.mxu0
  %v2018 = vadd.f32 0.0, %v2017
  %2019 = vmatmul.f32.gmra.mxu0 %v1952
  %v2020 = vpop.f32.mrf.mxu0
  %v2021 = vadd.f32 0.0, %v2020
  %2022 = vmatmul.f32.gmra.mxu0 %v1953
  %v2023 = vpop.f32.mrf.mxu0
  %v2024 = vadd.f32 0.0, %v2023
  %2025 = vmatmul.f32.gmra.mxu0 %v1954
  %v2026 = vpop.f32.mrf.mxu0
  %v2027 = vadd.f32 0.0, %v2026
  %2028 = vmatmul.f32.gmra.mxu0 %v1955
  %v2029 = vpop.f32.mrf.mxu0
  %v2030 = vadd.f32 0.0, %v2029
  %2031 = vmatmul.f32.gmra.mxu0 %v1956
  %v2032 = vpop.f32.mrf.mxu0
  %v2033 = vadd.f32 0.0, %v2032
  %2034 = vmatmul.f32.gmra.mxu0 %v1957
  %v2035 = vpop.f32.mrf.mxu0
  %v2036 = vadd.f32 0.0, %v2035
  %2037 = vmatmul.f32.gmra.mxu0 %v1958
  %v2038 = vpop.f32.mrf.mxu0
  %v2039 = vadd.f32 0.0, %v2038
  %2040 = vdwg.mxu0
  %2041 = vmatpush.msra.mxu0 %v1054
  %2042 = vmatpush.msra.mxu0 %v1051
  %2043 = vmatpush.msra.mxu0 %v1048
  %2044 = vmatpush.msra.mxu0 %v1045
  %2045 = vmatpush.msra.mxu0 %v1042
  %2046 = vmatpush.msra.mxu0 %v1039
  %2047 = vmatpush.msra.mxu0 %v1036
  %2048 = vmatpush.msra.mxu0 %v1033
  %2049 = vmatpush.msra.mxu0 %v1030
  %2050 = vmatpush.msra.mxu0 %v1027
  %2051 = vmatpush.msra.mxu0 %v1024
  %2052 = vmatpush.msra.mxu0 %v1021
  %2053 = vmatpush.msra.mxu0 %v1018
  %2054 = vmatpush.msra.mxu0 %v1015
  %2055 = vmatpush.msra.mxu0 %v1012
  %2056 = vmatpush.msra.mxu0 %v1009
  %2057 = vmatmul.f32.gmra.mxu0 %v1951
  %v2058 = vpop.f32.mrf.mxu0
  %v2059 = vadd.f32 0.0, %v2058
  %2060 = vmatmul.f32.gmra.mxu0 %v1952
  %v2061 = vpop.f32.mrf.mxu0
  %v2062 = vadd.f32 0.0, %v2061
  %2063 = vmatmul.f32.gmra.mxu0 %v1953
  %v2064 = vpop.f32.mrf.mxu0
  %v2065 = vadd.f32 0.0, %v2064
  %2066 = vmatmul.f32.gmra.mxu0 %v1954
  %v2067 = vpop.f32.mrf.mxu0
  %v2068 = vadd.f32 0.0, %v2067
  %2069 = vmatmul.f32.gmra.mxu0 %v1955
  %v2070 = vpop.f32.mrf.mxu0
  %v2071 = vadd.f32 0.0, %v2070
  %2072 = vmatmul.f32.gmra.mxu0 %v1956
  %v2073 = vpop.f32.mrf.mxu0
  %v2074 = vadd.f32 0.0, %v2073
  %2075 = vmatmul.f32.gmra.mxu0 %v1957
  %v2076 = vpop.f32.mrf.mxu0
  %v2077 = vadd.f32 0.0, %v2076
  %2078 = vmatmul.f32.gmra.mxu0 %v1958
  %v2079 = vpop.f32.mrf.mxu0
  %v2080 = vadd.f32 0.0, %v2079
  %2081 = vdwg.mxu0
  %2082 = vmatpush.msra.mxu0 %v2080
  %2083 = vmatpush.msra.mxu0 %v2077
  %2084 = vmatpush.msra.mxu0 %v2074
  %2085 = vmatpush.msra.mxu0 %v2071
  %2086 = vmatpush.msra.mxu0 %v2068
  %2087 = vmatpush.msra.mxu0 %v2065
  %2088 = vmatpush.msra.mxu0 %v2062
  %2089 = vmatpush.msra.mxu0 %v2059
  %2090 = vmatpush.msra.mxu0 %v2039
  %2091 = vmatpush.msra.mxu0 %v2036
  %2092 = vmatpush.msra.mxu0 %v2033
  %2093 = vmatpush.msra.mxu0 %v2030
  %2094 = vmatpush.msra.mxu0 %v2027
  %2095 = vmatpush.msra.mxu0 %v2024
  %2096 = vmatpush.msra.mxu0 %v2021
  %2097 = vmatpush.msra.mxu0 %v2018
  %2098 = vmatmul.f32.gmra.mxu0 %v999
  %v2099 = vpop.f32.mrf.mxu0
  %v2100 = vadd.f32 0.0, %v2099
  %2101 = vmatmul.f32.gmra.mxu0 %v1000
  %v2102 = vpop.f32.mrf.mxu0
  %v2103 = vadd.f32 0.0, %v2102
  %2104 = vmatmul.f32.gmra.mxu0 %v1001
  %v2105 = vpop.f32.mrf.mxu0
  %v2106 = vadd.f32 0.0, %v2105
  %2107 = vmatmul.f32.gmra.mxu0 %v1002
  %v2108 = vpop.f32.mrf.mxu0
  %v2109 = vadd.f32 0.0, %v2108
  %2110 = vmatmul.f32.gmra.mxu0 %v1003
  %v2111 = vpop.f32.mrf.mxu0
  %v2112 = vadd.f32 0.0, %v2111
  %2113 = vmatmul.f32.gmra.mxu0 %v1004
  %v2114 = vpop.f32.mrf.mxu0
  %v2115 = vadd.f32 0.0, %v2114
  %2116 = vmatmul.f32.gmra.mxu0 %v1005
  %v2117 = vpop.f32.mrf.mxu0
  %v2118 = vadd.f32 0.0, %v2117
  %2119 = vmatmul.f32.gmra.mxu0 %v1006
  %v2120 = vpop.f32.mrf.mxu0
  %v2121 = vadd.f32 0.0, %v2120
  %2122 = vdwg.mxu0
  %v2123 = vadd.f32 %v1977, %v2100
  %v2124 = vadd.f32 %v1980, %v2103
  %v2125 = vadd.f32 %v1983, %v2106
  %v2126 = vadd.f32 %v1986, %v2109
  %v2127 = vadd.f32 %v1989, %v2112
  %v2128 = vadd.f32 %v1992, %v2115
  %v2129 = vadd.f32 %v1995, %v2118
  %v2130 = vadd.f32 %v1998, %v2121
  %v2131 = vadd.f32 %v2123, %v1057
  %v2132 = vadd.f32 %v2124, %v1057
  %v2133 = vadd.f32 %v2125, %v1057
  %v2134 = vadd.f32 %v2126, %v1057
  %v2135 = vadd.f32 %v2127, %v1057
  %v2136 = vadd.f32 %v2128, %v1057
  %v2137 = vadd.f32 %v2129, %v1057
  %v2138 = vadd.f32 %v2130, %v1057
  %2139 = vmatpush.msra.mxu0 %v1052
  %2140 = vmatpush.msra.mxu0 %v1049
  %2141 = vmatpush.msra.mxu0 %v1046
  %2142 = vmatpush.msra.mxu0 %v1043
  %2143 = vmatpush.msra.mxu0 %v1040
  %2144 = vmatpush.msra.mxu0 %v1037
  %2145 = vmatpush.msra.mxu0 %v1034
  %2146 = vmatpush.msra.mxu0 %v1031
  %2147 = vmatpush.msra.mxu0 %v1028
  %2148 = vmatpush.msra.mxu0 %v1025
  %2149 = vmatpush.msra.mxu0 %v1022
  %2150 = vmatpush.msra.mxu0 %v1019
  %2151 = vmatpush.msra.mxu0 %v1016
  %2152 = vmatpush.msra.mxu0 %v1013
  %2153 = vmatpush.msra.mxu0 %v1010
  %2154 = vmatpush.msra.mxu0 %v1007
  %2155 = vmatmul.f32.gmra.mxu0 %v2131
  %v2156 = vpop.f32.mrf.mxu0
  %v2157 = vadd.f32 0.0, %v2156
  %2158 = vmatmul.f32.gmra.mxu0 %v2132
  %v2159 = vpop.f32.mrf.mxu0
  %v2160 = vadd.f32 0.0, %v2159
  %2161 = vmatmul.f32.gmra.mxu0 %v2133
  %v2162 = vpop.f32.mrf.mxu0
  %v2163 = vadd.f32 0.0, %v2162
  %2164 = vmatmul.f32.gmra.mxu0 %v2134
  %v2165 = vpop.f32.mrf.mxu0
  %v2166 = vadd.f32 0.0, %v2165
  %2167 = vmatmul.f32.gmra.mxu0 %v2135
  %v2168 = vpop.f32.mrf.mxu0
  %v2169 = vadd.f32 0.0, %v2168
  %2170 = vmatmul.f32.gmra.mxu0 %v2136
  %v2171 = vpop.f32.mrf.mxu0
  %v2172 = vadd.f32 0.0, %v2171
  %2173 = vmatmul.f32.gmra.mxu0 %v2137
  %v2174 = vpop.f32.mrf.mxu0
  %v2175 = vadd.f32 0.0, %v2174
  %2176 = vmatmul.f32.gmra.mxu0 %v2138
  %v2177 = vpop.f32.mrf.mxu0
  %v2178 = vadd.f32 0.0, %v2177
  %2179 = vdwg.mxu0
  %2180 = vmatpush.msra.mxu0 %v1053
  %2181 = vmatpush.msra.mxu0 %v1050
  %2182 = vmatpush.msra.mxu0 %v1047
  %2183 = vmatpush.msra.mxu0 %v1044
  %2184 = vmatpush.msra.mxu0 %v1041
  %2185 = vmatpush.msra.mxu0 %v1038
  %2186 = vmatpush.msra.mxu0 %v1035
  %2187 = vmatpush.msra.mxu0 %v1032
  %2188 = vmatpush.msra.mxu0 %v1029
  %2189 = vmatpush.msra.mxu0 %v1026
  %2190 = vmatpush.msra.mxu0 %v1023
  %2191 = vmatpush.msra.mxu0 %v1020
  %2192 = vmatpush.msra.mxu0 %v1017
  %2193 = vmatpush.msra.mxu0 %v1014
  %2194 = vmatpush.msra.mxu0 %v1011
  %2195 = vmatpush.msra.mxu0 %v1008
  %2196 = vmatmul.f32.gmra.mxu0 %v2131
  %v2197 = vpop.f32.mrf.mxu0
  %v2198 = vadd.f32 0.0, %v2197
  %2199 = vmatmul.f32.gmra.mxu0 %v2132
  %v2200 = vpop.f32.mrf.mxu0
  %v2201 = vadd.f32 0.0, %v2200
  %2202 = vmatmul.f32.gmra.mxu0 %v2133
  %v2203 = vpop.f32.mrf.mxu0
  %v2204 = vadd.f32 0.0, %v2203
  %2205 = vmatmul.f32.gmra.mxu0 %v2134
  %v2206 = vpop.f32.mrf.mxu0
  %v2207 = vadd.f32 0.0, %v2206
  %2208 = vmatmul.f32.gmra.mxu0 %v2135
  %v2209 = vpop.f32.mrf.mxu0
  %v2210 = vadd.f32 0.0, %v2209
  %2211 = vmatmul.f32.gmra.mxu0 %v2136
  %v2212 = vpop.f32.mrf.mxu0
  %v2213 = vadd.f32 0.0, %v2212
  %2214 = vmatmul.f32.gmra.mxu0 %v2137
  %v2215 = vpop.f32.mrf.mxu0
  %v2216 = vadd.f32 0.0, %v2215
  %2217 = vmatmul.f32.gmra.mxu0 %v2138
  %v2218 = vpop.f32.mrf.mxu0
  %v2219 = vadd.f32 0.0, %v2218
  %2220 = vdwg.mxu0
  %2221 = vmatpush.msra.mxu0 %v1054
  %2222 = vmatpush.msra.mxu0 %v1051
  %2223 = vmatpush.msra.mxu0 %v1048
  %2224 = vmatpush.msra.mxu0 %v1045
  %2225 = vmatpush.msra.mxu0 %v1042
  %2226 = vmatpush.msra.mxu0 %v1039
  %2227 = vmatpush.msra.mxu0 %v1036
  %2228 = vmatpush.msra.mxu0 %v1033
  %2229 = vmatpush.msra.mxu0 %v1030
  %2230 = vmatpush.msra.mxu0 %v1027
  %2231 = vmatpush.msra.mxu0 %v1024
  %2232 = vmatpush.msra.mxu0 %v1021
  %2233 = vmatpush.msra.mxu0 %v1018
  %2234 = vmatpush.msra.mxu0 %v1015
  %2235 = vmatpush.msra.mxu0 %v1012
  %2236 = vmatpush.msra.mxu0 %v1009
  %2237 = vmatmul.f32.gmra.mxu0 %v2131
  %v2238 = vpop.f32.mrf.mxu0
  %v2239 = vadd.f32 0.0, %v2238
  %2240 = vmatmul.f32.gmra.mxu0 %v2132
  %v2241 = vpop.f32.mrf.mxu0
  %v2242 = vadd.f32 0.0, %v2241
  %2243 = vmatmul.f32.gmra.mxu0 %v2133
  %v2244 = vpop.f32.mrf.mxu0
  %v2245 = vadd.f32 0.0, %v2244
  %2246 = vmatmul.f32.gmra.mxu0 %v2134
  %v2247 = vpop.f32.mrf.mxu0
  %v2248 = vadd.f32 0.0, %v2247
  %2249 = vmatmul.f32.gmra.mxu0 %v2135
  %v2250 = vpop.f32.mrf.mxu0
  %v2251 = vadd.f32 0.0, %v2250
  %2252 = vmatmul.f32.gmra.mxu0 %v2136
  %v2253 = vpop.f32.mrf.mxu0
  %v2254 = vadd.f32 0.0, %v2253
  %2255 = vmatmul.f32.gmra.mxu0 %v2137
  %v2256 = vpop.f32.mrf.mxu0
  %v2257 = vadd.f32 0.0, %v2256
  %2258 = vmatmul.f32.gmra.mxu0 %v2138
  %v2259 = vpop.f32.mrf.mxu0
  %v2260 = vadd.f32 0.0, %v2259
  %2261 = vdwg.mxu0
  %2262 = vmatpush.msra.mxu0 %v2260
  %2263 = vmatpush.msra.mxu0 %v2257
  %2264 = vmatpush.msra.mxu0 %v2254
  %2265 = vmatpush.msra.mxu0 %v2251
  %2266 = vmatpush.msra.mxu0 %v2248
  %2267 = vmatpush.msra.mxu0 %v2245
  %2268 = vmatpush.msra.mxu0 %v2242
  %2269 = vmatpush.msra.mxu0 %v2239
  %2270 = vmatpush.msra.mxu0 %v2219
  %2271 = vmatpush.msra.mxu0 %v2216
  %2272 = vmatpush.msra.mxu0 %v2213
  %2273 = vmatpush.msra.mxu0 %v2210
  %2274 = vmatpush.msra.mxu0 %v2207
  %2275 = vmatpush.msra.mxu0 %v2204
  %2276 = vmatpush.msra.mxu0 %v2201
  %2277 = vmatpush.msra.mxu0 %v2198
  %2278 = vmatmul.f32.gmra.mxu0 %v999
  %v2279 = vpop.f32.mrf.mxu0
  %v2280 = vadd.f32 0.0, %v2279
  %2281 = vmatmul.f32.gmra.mxu0 %v1000
  %v2282 = vpop.f32.mrf.mxu0
  %v2283 = vadd.f32 0.0, %v2282
  %2284 = vmatmul.f32.gmra.mxu0 %v1001
  %v2285 = vpop.f32.mrf.mxu0
  %v2286 = vadd.f32 0.0, %v2285
  %2287 = vmatmul.f32.gmra.mxu0 %v1002
  %v2288 = vpop.f32.mrf.mxu0
  %v2289 = vadd.f32 0.0, %v2288
  %2290 = vmatmul.f32.gmra.mxu0 %v1003
  %v2291 = vpop.f32.mrf.mxu0
  %v2292 = vadd.f32 0.0, %v2291
  %2293 = vmatmul.f32.gmra.mxu0 %v1004
  %v2294 = vpop.f32.mrf.mxu0
  %v2295 = vadd.f32 0.0, %v2294
  %2296 = vmatmul.f32.gmra.mxu0 %v1005
  %v2297 = vpop.f32.mrf.mxu0
  %v2298 = vadd.f32 0.0, %v2297
  %2299 = vmatmul.f32.gmra.mxu0 %v1006
  %v2300 = vpop.f32.mrf.mxu0
  %v2301 = vadd.f32 0.0, %v2300
  %2302 = vdwg.mxu0
  %v2303 = vadd.f32 %v2157, %v2280
  %v2304 = vadd.f32 %v2160, %v2283
  %v2305 = vadd.f32 %v2163, %v2286
  %v2306 = vadd.f32 %v2166, %v2289
  %v2307 = vadd.f32 %v2169, %v2292
  %v2308 = vadd.f32 %v2172, %v2295
  %v2309 = vadd.f32 %v2175, %v2298
  %v2310 = vadd.f32 %v2178, %v2301
  %v2311 = vadd.f32 %v2303, %v1057
  %v2312 = vadd.f32 %v2304, %v1057
  %v2313 = vadd.f32 %v2305, %v1057
  %v2314 = vadd.f32 %v2306, %v1057
  %v2315 = vadd.f32 %v2307, %v1057
  %v2316 = vadd.f32 %v2308, %v1057
  %v2317 = vadd.f32 %v2309, %v1057
  %v2318 = vadd.f32 %v2310, %v1057
  %2319 = vmatpush.msra.mxu0 %v1052
  %2320 = vmatpush.msra.mxu0 %v1049
  %2321 = vmatpush.msra.mxu0 %v1046
  %2322 = vmatpush.msra.mxu0 %v1043
  %2323 = vmatpush.msra.mxu0 %v1040
  %2324 = vmatpush.msra.mxu0 %v1037
  %2325 = vmatpush.msra.mxu0 %v1034
  %2326 = vmatpush.msra.mxu0 %v1031
  %2327 = vmatpush.msra.mxu0 %v1028
  %2328 = vmatpush.msra.mxu0 %v1025
  %2329 = vmatpush.msra.mxu0 %v1022
  %2330 = vmatpush.msra.mxu0 %v1019
  %2331 = vmatpush.msra.mxu0 %v1016
  %2332 = vmatpush.msra.mxu0 %v1013
  %2333 = vmatpush.msra.mxu0 %v1010
  %2334 = vmatpush.msra.mxu0 %v1007
  %2335 = vmatmul.f32.gmra.mxu0 %v2311
  %v2336 = vpop.f32.mrf.mxu0
  %v2337 = vadd.f32 0.0, %v2336
  %2338 = vmatmul.f32.gmra.mxu0 %v2312
  %v2339 = vpop.f32.mrf.mxu0
  %v2340 = vadd.f32 0.0, %v2339
  %2341 = vmatmul.f32.gmra.mxu0 %v2313
  %v2342 = vpop.f32.mrf.mxu0
  %v2343 = vadd.f32 0.0, %v2342
  %2344 = vmatmul.f32.gmra.mxu0 %v2314
  %v2345 = vpop.f32.mrf.mxu0
  %v2346 = vadd.f32 0.0, %v2345
  %2347 = vmatmul.f32.gmra.mxu0 %v2315
  %v2348 = vpop.f32.mrf.mxu0
  %v2349 = vadd.f32 0.0, %v2348
  %2350 = vmatmul.f32.gmra.mxu0 %v2316
  %v2351 = vpop.f32.mrf.mxu0
  %v2352 = vadd.f32 0.0, %v2351
  %2353 = vmatmul.f32.gmra.mxu0 %v2317
  %v2354 = vpop.f32.mrf.mxu0
  %v2355 = vadd.f32 0.0, %v2354
  %2356 = vmatmul.f32.gmra.mxu0 %v2318
  %v2357 = vpop.f32.mrf.mxu0
  %v2358 = vadd.f32 0.0, %v2357
  %2359 = vdwg.mxu0
  %2360 = vmatpush.msra.mxu0 %v1053
  %2361 = vmatpush.msra.mxu0 %v1050
  %2362 = vmatpush.msra.mxu0 %v1047
  %2363 = vmatpush.msra.mxu0 %v1044
  %2364 = vmatpush.msra.mxu0 %v1041
  %2365 = vmatpush.msra.mxu0 %v1038
  %2366 = vmatpush.msra.mxu0 %v1035
  %2367 = vmatpush.msra.mxu0 %v1032
  %2368 = vmatpush.msra.mxu0 %v1029
  %2369 = vmatpush.msra.mxu0 %v1026
  %2370 = vmatpush.msra.mxu0 %v1023
  %2371 = vmatpush.msra.mxu0 %v1020
  %2372 = vmatpush.msra.mxu0 %v1017
  %2373 = vmatpush.msra.mxu0 %v1014
  %2374 = vmatpush.msra.mxu0 %v1011
  %2375 = vmatpush.msra.mxu0 %v1008
  %2376 = vmatmul.f32.gmra.mxu0 %v2311
  %v2377 = vpop.f32.mrf.mxu0
  %v2378 = vadd.f32 0.0, %v2377
  %2379 = vmatmul.f32.gmra.mxu0 %v2312
  %v2380 = vpop.f32.mrf.mxu0
  %v2381 = vadd.f32 0.0, %v2380
  %2382 = vmatmul.f32.gmra.mxu0 %v2313
  %v2383 = vpop.f32.mrf.mxu0
  %v2384 = vadd.f32 0.0, %v2383
  %2385 = vmatmul.f32.gmra.mxu0 %v2314
  %v2386 = vpop.f32.mrf.mxu0
  %v2387 = vadd.f32 0.0, %v2386
  %2388 = vmatmul.f32.gmra.mxu0 %v2315
  %v2389 = vpop.f32.mrf.mxu0
  %v2390 = vadd.f32 0.0, %v2389
  %2391 = vmatmul.f32.gmra.mxu0 %v2316
  %v2392 = vpop.f32.mrf.mxu0
  %v2393 = vadd.f32 0.0, %v2392
  %2394 = vmatmul.f32.gmra.mxu0 %v2317
  %v2395 = vpop.f32.mrf.mxu0
  %v2396 = vadd.f32 0.0, %v2395
  %2397 = vmatmul.f32.gmra.mxu0 %v2318
  %v2398 = vpop.f32.mrf.mxu0
  %v2399 = vadd.f32 0.0, %v2398
  %2400 = vdwg.mxu0
  %2401 = vmatpush.msra.mxu0 %v1054
  %2402 = vmatpush.msra.mxu0 %v1051
  %2403 = vmatpush.msra.mxu0 %v1048
  %2404 = vmatpush.msra.mxu0 %v1045
  %2405 = vmatpush.msra.mxu0 %v1042
  %2406 = vmatpush.msra.mxu0 %v1039
  %2407 = vmatpush.msra.mxu0 %v1036
  %2408 = vmatpush.msra.mxu0 %v1033
  %2409 = vmatpush.msra.mxu0 %v1030
  %2410 = vmatpush.msra.mxu0 %v1027
  %2411 = vmatpush.msra.mxu0 %v1024
  %2412 = vmatpush.msra.mxu0 %v1021
  %2413 = vmatpush.msra.mxu0 %v1018
  %2414 = vmatpush.msra.mxu0 %v1015
  %2415 = vmatpush.msra.mxu0 %v1012
  %2416 = vmatpush.msra.mxu0 %v1009
  %2417 = vmatmul.f32.gmra.mxu0 %v2311
  %v2418 = vpop.f32.mrf.mxu0
  %v2419 = vadd.f32 0.0, %v2418
  %2420 = vmatmul.f32.gmra.mxu0 %v2312
  %v2421 = vpop.f32.mrf.mxu0
  %v2422 = vadd.f32 0.0, %v2421
  %2423 = vmatmul.f32.gmra.mxu0 %v2313
  %v2424 = vpop.f32.mrf.mxu0
  %v2425 = vadd.f32 0.0, %v2424
  %2426 = vmatmul.f32.gmra.mxu0 %v2314
  %v2427 = vpop.f32.mrf.mxu0
  %v2428 = vadd.f32 0.0, %v2427
  %2429 = vmatmul.f32.gmra.mxu0 %v2315
  %v2430 = vpop.f32.mrf.mxu0
  %v2431 = vadd.f32 0.0, %v2430
  %2432 = vmatmul.f32.gmra.mxu0 %v2316
  %v2433 = vpop.f32.mrf.mxu0
  %v2434 = vadd.f32 0.0, %v2433
  %2435 = vmatmul.f32.gmra.mxu0 %v2317
  %v2436 = vpop.f32.mrf.mxu0
  %v2437 = vadd.f32 0.0, %v2436
  %2438 = vmatmul.f32.gmra.mxu0 %v2318
  %v2439 = vpop.f32.mrf.mxu0
  %v2440 = vadd.f32 0.0, %v2439
  %2441 = vdwg.mxu0
  %2442 = vmatpush.msra.mxu0 %v2440
  %2443 = vmatpush.msra.mxu0 %v2437
  %2444 = vmatpush.msra.mxu0 %v2434
  %2445 = vmatpush.msra.mxu0 %v2431
  %2446 = vmatpush.msra.mxu0 %v2428
  %2447 = vmatpush.msra.mxu0 %v2425
  %2448 = vmatpush.msra.mxu0 %v2422
  %2449 = vmatpush.msra.mxu0 %v2419
  %2450 = vmatpush.msra.mxu0 %v2399
  %2451 = vmatpush.msra.mxu0 %v2396
  %2452 = vmatpush.msra.mxu0 %v2393
  %2453 = vmatpush.msra.mxu0 %v2390
  %2454 = vmatpush.msra.mxu0 %v2387
  %2455 = vmatpush.msra.mxu0 %v2384
  %2456 = vmatpush.msra.mxu0 %v2381
  %2457 = vmatpush.msra.mxu0 %v2378
  %2458 = vmatmul.f32.gmra.mxu0 %v999
  %v2459 = vpop.f32.mrf.mxu0
  %v2460 = vadd.f32 0.0, %v2459
  %2461 = vmatmul.f32.gmra.mxu0 %v1000
  %v2462 = vpop.f32.mrf.mxu0
  %v2463 = vadd.f32 0.0, %v2462
  %2464 = vmatmul.f32.gmra.mxu0 %v1001
  %v2465 = vpop.f32.mrf.mxu0
  %v2466 = vadd.f32 0.0, %v2465
  %2467 = vmatmul.f32.gmra.mxu0 %v1002
  %v2468 = vpop.f32.mrf.mxu0
  %v2469 = vadd.f32 0.0, %v2468
  %2470 = vmatmul.f32.gmra.mxu0 %v1003
  %v2471 = vpop.f32.mrf.mxu0
  %v2472 = vadd.f32 0.0, %v2471
  %2473 = vmatmul.f32.gmra.mxu0 %v1004
  %v2474 = vpop.f32.mrf.mxu0
  %v2475 = vadd.f32 0.0, %v2474
  %2476 = vmatmul.f32.gmra.mxu0 %v1005
  %v2477 = vpop.f32.mrf.mxu0
  %v2478 = vadd.f32 0.0, %v2477
  %2479 = vmatmul.f32.gmra.mxu0 %v1006
  %v2480 = vpop.f32.mrf.mxu0
  %v2481 = vadd.f32 0.0, %v2480
  %2482 = vdwg.mxu0
  %v2483 = vadd.f32 %v2337, %v2460
  %v2484 = vadd.f32 %v2340, %v2463
  %v2485 = vadd.f32 %v2343, %v2466
  %v2486 = vadd.f32 %v2346, %v2469
  %v2487 = vadd.f32 %v2349, %v2472
  %v2488 = vadd.f32 %v2352, %v2475
  %v2489 = vadd.f32 %v2355, %v2478
  %v2490 = vadd.f32 %v2358, %v2481
  %v2491 = vadd.f32 %v2483, %v1057
  %v2492 = vadd.f32 %v2484, %v1057
  %v2493 = vadd.f32 %v2485, %v1057
  %v2494 = vadd.f32 %v2486, %v1057
  %v2495 = vadd.f32 %v2487, %v1057
  %v2496 = vadd.f32 %v2488, %v1057
  %v2497 = vadd.f32 %v2489, %v1057
  %v2498 = vadd.f32 %v2490, %v1057
  %v2499 = vld [vmem:[%s8] sm:$0xff]
  %v2500 = vld [vmem:[%s8 + $0x8] sm:$0xff]
  %v2501 = vld [vmem:[%s8 + $0x10] sm:$0xff]
  %v2502 = vld [vmem:[%s8 + $0x18] sm:$0xff]
  %v2503 = vld [vmem:[%s8 + $0x20] sm:$0xff]
  %v2504 = vld [vmem:[%s8 + $0x28] sm:$0xff]
  %v2505 = vld [vmem:[%s8 + $0x30] sm:$0xff]
  %v2506 = vld [vmem:[%s8 + $0x38] sm:$0xff]
  %v2507 = vld [vmem:[%s8 + $0x40] sm:$0xff]
  %v2508 = vld [vmem:[%s8 + $0x48] sm:$0xff]
  %v2509 = vld [vmem:[%s8 + $0x50] sm:$0xff]
  %v2510 = vld [vmem:[%s8 + $0x58] sm:$0xff]
  %v2511 = vld [vmem:[%s8 + $0x60] sm:$0xff]
  %v2512 = vld [vmem:[%s8 + $0x68] sm:$0xff]
  %v2513 = vld [vmem:[%s8 + $0x70] sm:$0xff]
  %v2514 = vld [vmem:[%s8 + $0x78] sm:$0xff]
  %v2515 = vld [vmem:[%s9] sm:$0x1]
  %v2517 = vperm.slane %v2515, 0
  %2519 = vmatpush.msra.mxu0 %v2514
  %2520 = vmatpush.msra.mxu0 %v2513
  %2521 = vmatpush.msra.mxu0 %v2512
  %2522 = vmatpush.msra.mxu0 %v2511
  %2523 = vmatpush.msra.mxu0 %v2510
  %2524 = vmatpush.msra.mxu0 %v2509
  %2525 = vmatpush.msra.mxu0 %v2508
  %2526 = vmatpush.msra.mxu0 %v2507
  %2527 = vmatpush.msra.mxu0 %v2506
  %2528 = vmatpush.msra.mxu0 %v2505
  %2529 = vmatpush.msra.mxu0 %v2504
  %2530 = vmatpush.msra.mxu0 %v2503
  %2531 = vmatpush.msra.mxu0 %v2502
  %2532 = vmatpush.msra.mxu0 %v2501
  %2533 = vmatpush.msra.mxu0 %v2500
  %2534 = vmatpush.msra.mxu0 %v2499
  %2535 = vmatmul.f32.gmra.mxu0 %v2491
  %v2536 = vpop.f32.mrf.mxu0
  %v2537 = vadd.f32 %v2517, %v2536
  %2538 = vmatmul.f32.gmra.mxu0 %v2492
  %v2539 = vpop.f32.mrf.mxu0
  %v2540 = vadd.f32 %v2517, %v2539
  %2541 = vmatmul.f32.gmra.mxu0 %v2493
  %v2542 = vpop.f32.mrf.mxu0
  %v2543 = vadd.f32 %v2517, %v2542
  %2544 = vmatmul.f32.gmra.mxu0 %v2494
  %v2545 = vpop.f32.mrf.mxu0
  %v2546 = vadd.f32 %v2517, %v2545
  %2547 = vmatmul.f32.gmra.mxu0 %v2495
  %v2548 = vpop.f32.mrf.mxu0
  %v2549 = vadd.f32 %v2517, %v2548
  %2550 = vmatmul.f32.gmra.mxu0 %v2496
  %v2551 = vpop.f32.mrf.mxu0
  %v2552 = vadd.f32 %v2517, %v2551
  %2553 = vmatmul.f32.gmra.mxu0 %v2497
  %v2554 = vpop.f32.mrf.mxu0
  %v2555 = vadd.f32 %v2517, %v2554
  %2556 = vmatmul.f32.gmra.mxu0 %v2498
  %v2557 = vpop.f32.mrf.mxu0
  %v2558 = vadd.f32 %v2517, %v2557
  %2559 = vdwg.mxu0
  %vm2560 = vcmp.gt.f32.partialorder %v2537, 0.0
  %vm2561 = vcmp.gt.f32.partialorder %v2540, 0.0
  %vm2562 = vcmp.gt.f32.partialorder %v2543, 0.0
  %vm2563 = vcmp.gt.f32.partialorder %v2546, 0.0
  %vm2564 = vcmp.gt.f32.partialorder %v2549, 0.0
  %vm2565 = vcmp.gt.f32.partialorder %v2552, 0.0
  %vm2566 = vcmp.gt.f32.partialorder %v2555, 0.0
  %vm2567 = vcmp.gt.f32.partialorder %v2558, 0.0
  %v2568 = vmul.f32 %v2537, 0.01
  %v2569 = vmul.f32 %v2540, 0.01
  %v2570 = vmul.f32 %v2543, 0.01
  %v2571 = vmul.f32 %v2546, 0.01
  %v2572 = vmul.f32 %v2549, 0.01
  %v2573 = vmul.f32 %v2552, 0.01
  %v2574 = vmul.f32 %v2555, 0.01
  %v2575 = vmul.f32 %v2558, 0.01
  %v2576 = vsel %vm2560, %v2537, %v2568
  %v2577 = vsel %vm2561, %v2540, %v2569
  %v2578 = vsel %vm2562, %v2543, %v2570
  %v2579 = vsel %vm2563, %v2546, %v2571
  %v2580 = vsel %vm2564, %v2549, %v2572
  %v2581 = vsel %vm2565, %v2552, %v2573
  %v2582 = vsel %vm2566, %v2555, %v2574
  %v2583 = vsel %vm2567, %v2558, %v2575
  %v2584 = vld [vmem:[%s10] sm:$0xff]
  %v2585 = vld [vmem:[%s10 + $0x8] sm:$0xff]
  %v2586 = vld [vmem:[%s10 + $0x10] sm:$0xff]
  %v2587 = vld [vmem:[%s10 + $0x18] sm:$0xff]
  %v2588 = vld [vmem:[%s10 + $0x20] sm:$0xff]
  %v2589 = vld [vmem:[%s10 + $0x28] sm:$0xff]
  %v2590 = vld [vmem:[%s10 + $0x30] sm:$0xff]
  %v2591 = vld [vmem:[%s10 + $0x38] sm:$0xff]
  %v2592 = vld [vmem:[%s10 + $0x40] sm:$0xff]
  %v2593 = vld [vmem:[%s10 + $0x48] sm:$0xff]
  %v2594 = vld [vmem:[%s10 + $0x50] sm:$0xff]
  %v2595 = vld [vmem:[%s10 + $0x58] sm:$0xff]
  %v2596 = vld [vmem:[%s10 + $0x60] sm:$0xff]
  %v2597 = vld [vmem:[%s10 + $0x68] sm:$0xff]
  %v2598 = vld [vmem:[%s10 + $0x70] sm:$0xff]
  %v2599 = vld [vmem:[%s10 + $0x78] sm:$0xff]
  %v2600 = vld [vmem:[%s11] sm:$0x1]
  %v2602 = vperm.slane %v2600, 0
  %2604 = vmatpush.msra.mxu0 %v2599
  %2605 = vmatpush.msra.mxu0 %v2598
  %2606 = vmatpush.msra.mxu0 %v2597
  %2607 = vmatpush.msra.mxu0 %v2596
  %2608 = vmatpush.msra.mxu0 %v2595
  %2609 = vmatpush.msra.mxu0 %v2594
  %2610 = vmatpush.msra.mxu0 %v2593
  %2611 = vmatpush.msra.mxu0 %v2592
  %2612 = vmatpush.msra.mxu0 %v2591
  %2613 = vmatpush.msra.mxu0 %v2590
  %2614 = vmatpush.msra.mxu0 %v2589
  %2615 = vmatpush.msra.mxu0 %v2588
  %2616 = vmatpush.msra.mxu0 %v2587
  %2617 = vmatpush.msra.mxu0 %v2586
  %2618 = vmatpush.msra.mxu0 %v2585
  %2619 = vmatpush.msra.mxu0 %v2584
  %2620 = vmatmul.f32.gmra.mxu0 %v2576
  %v2621 = vpop.f32.mrf.mxu0
  %v2622 = vadd.f32 %v2602, %v2621
  %2623 = vmatmul.f32.gmra.mxu0 %v2577
  %v2624 = vpop.f32.mrf.mxu0
  %v2625 = vadd.f32 %v2602, %v2624
  %2626 = vmatmul.f32.gmra.mxu0 %v2578
  %v2627 = vpop.f32.mrf.mxu0
  %v2628 = vadd.f32 %v2602, %v2627
  %2629 = vmatmul.f32.gmra.mxu0 %v2579
  %v2630 = vpop.f32.mrf.mxu0
  %v2631 = vadd.f32 %v2602, %v2630
  %2632 = vmatmul.f32.gmra.mxu0 %v2580
  %v2633 = vpop.f32.mrf.mxu0
  %v2634 = vadd.f32 %v2602, %v2633
  %2635 = vmatmul.f32.gmra.mxu0 %v2581
  %v2636 = vpop.f32.mrf.mxu0
  %v2637 = vadd.f32 %v2602, %v2636
  %2638 = vmatmul.f32.gmra.mxu0 %v2582
  %v2639 = vpop.f32.mrf.mxu0
  %v2640 = vadd.f32 %v2602, %v2639
  %2641 = vmatmul.f32.gmra.mxu0 %v2583
  %v2642 = vpop.f32.mrf.mxu0
  %v2643 = vadd.f32 %v2602, %v2642
  %2644 = vdwg.mxu0
  %2645 = vst [vmem:[%s12] sm:$0xff] %v2622
  %2646 = vst [vmem:[%s12 + $0x8] sm:$0xff] %v2625
  %2647 = vst [vmem:[%s12 + $0x10] sm:$0xff] %v2628
  %2648 = vst [vmem:[%s12 + $0x18] sm:$0xff] %v2631
  %2649 = vst [vmem:[%s12 + $0x20] sm:$0xff] %v2634
  %2650 = vst [vmem:[%s12 + $0x28] sm:$0xff] %v2637
  %2651 = vst [vmem:[%s12 + $0x30] sm:$0xff] %v2640
  %2652 = vst [vmem:[%s12 + $0x38] sm:$0xff] %v2643
  // Predicated region
  $region50: #{drgcn_8layers_forward.1} parent=0 // pred_check
    _
  $region51: #{drgcn_8layers_forward.1} parent=0 // pred_check_branch
    %2654 = sbr.rel (0) target = $region53
  $region52: #{drgcn_8layers_forward.1} parent=0 // pred_region
    _
  $region53: #{drgcn_8layers_forward.1} parent=0 // pred_fallthru
    _
  // Predicated region
  $region54: #{drgcn_8layers_forward.1} parent=0 // pred_check
    _
  $region55: #{drgcn_8layers_forward.1} parent=0 // pred_check_branch
    %2656 = sbr.rel (0) target = $region57
  $region56: #{drgcn_8layers_forward.1} parent=0 // pred_region
    _
  $region57: #{drgcn_8layers_forward.1} parent=0 // pred_fallthru
    _

</llo_original>
